<compile_context>
chip_gen: v5e
topology: v5e:2x2
jax: 0.10.0
libtpu: 0.0.40
codegen_flags: <defaults>
</compile_context>

<pallas_src>
import jax
import jax.numpy as jnp
from jax.experimental import pallas as pl
from jax.experimental.pallas import tpu as pltpu


_LANES = 128  # TPU lane width: K (=27*Cin) and Cout are zero-padded to multiples of this.


# --------------------------------------------------------------------------- kernel

def _ldc_matmul_kernel(x_ref, w_ref, o_ref):
    # x_ref: (TM, K_pad)        bf16  -- im2col rows (tap-major, Cin-minor), zero-padded lanes
    # w_ref: (K_pad, Cout_pad)  bf16  -- folded masked weights, constant index_map (resident)
    # o_ref: (TM, Cout_pad)     f32
    o_ref[...] = jnp.dot(x_ref[...], w_ref[...], preferred_element_type=jnp.float32)


# --------------------------------------------------------------------------- wrapper

def _effective_weight(weight, learnable_mask, theta):
    """Exact mirror of the PyTorch masked-weight computation (f32), incl. the
    .sum(2).sum(2) broadcasting quirk (summed (kd,kh) result indexed by kw lands on kd)."""
    center_mask = jnp.zeros((1, 1, 1, 3, 3), jnp.float32).at[0, 0, 0, 1, 1].set(1.0)
    base_mask = jnp.ones_like(weight)
    wsum = weight.sum(axis=2).sum(axis=2)                       # (Cout, Cin, 3) == torch .sum(2).sum(2)
    mask = base_mask - theta * learnable_mask * center_mask * wsum[:, :, :, None, None]
    return weight * mask                                        # (Cout, Cin, 3, 3, 3)


def _round_up(x, m):
    return (x + m - 1) // m * m


def _pick_tile_m(m_rows):
    # >=2 grid steps whenever possible (keeps both TensorCores busy on v7x megacore) and
    # <=2048 rows per step (double-buffered lhs + out blocks stay ~4.5 MiB << 32 MiB scoped VMEM).
    tm = 2048
    while tm > 256 and m_rows <= tm:
        tm //= 2
    return tm


def ldc_conv3d(x_ncdhw, weight, learnable_mask, theta):
    """Enhancement_texture_LDC.forward.

    x_ncdhw:        (N, Cin, D, H, W) f32
    weight:         (Cout, Cin, 3, 3, 3) f32  (PyTorch Conv3d layout)
    learnable_mask: (Cout, Cin, 1, 1, 1) f32
    theta:          (1,) f32
    returns:        (N, Cout, D, H, W) f32
    """
    N, Cin, D, H, W = x_ncdhw.shape
    Cout = weight.shape[0]
    assert weight.shape == (Cout, Cin, 3, 3, 3), "only 3x3x3 / stride 1 / pad 1 is lowered"

    # ---- masked ("LDC") weight, folded over the 27 taps: (27*Cin, Cout), MXU-shaped & padded ----
    K = 27 * Cin
    K_pad = _round_up(K, _LANES)
    Cout_pad = _round_up(Cout, _LANES)
    w_eff = _effective_weight(weight, learnable_mask, theta)             # (Cout, Cin, 3, 3, 3) f32
    w_mat = jnp.transpose(w_eff, (2, 3, 4, 1, 0)).reshape(K, Cout)       # rows: (kd,kh,kw) major, Cin minor
    w_mat = jnp.pad(w_mat, ((0, K_pad - K), (0, Cout_pad - Cout))).astype(jnp.bfloat16)

    # ---- activation: channels-last, zero-pad D/H/W by 1, fold the 27 taps into a lane-dense K ----
    x = jnp.transpose(x_ncdhw, (0, 2, 3, 4, 1))                          # (N, D, H, W, Cin)
    xp = jnp.pad(x, ((0, 0), (1, 1), (1, 1), (1, 1), (0, 0)))            # (N, D+2, H+2, W+2, Cin)
    taps = [xp[:, kd:kd + D, kh:kh + H, kw:kw + W, :]
            for kd in range(3) for kh in range(3) for kw in range(3)]    # tap order matches w_mat rows
    lhs = jnp.stack(taps, axis=4).reshape(N * D * H * W, K)              # rows = output voxels

    M = N * D * H * W
    TM = _pick_tile_m(M)
    M_pad = _round_up(M, TM)
    lhs = jnp.pad(lhs, ((0, M_pad - M), (0, K_pad - K))).astype(jnp.bfloat16)

    flops = 2 * M_pad * K_pad * Cout_pad
    bytes_accessed = M_pad * K_pad * 2 + K_pad * Cout_pad * 2 + M_pad * Cout_pad * 4

    out_mat = pl.pallas_call(
        _ldc_matmul_kernel,
        out_shape=jax.ShapeDtypeStruct((M_pad, Cout_pad), jnp.float32),
        grid=(M_pad // TM,),
        in_specs=[pl.BlockSpec((TM, K_pad), lambda i: (i, 0)),
                  pl.BlockSpec((K_pad, Cout_pad), lambda i: (0, 0))],    # constant -> resident weight tile
        out_specs=pl.BlockSpec((TM, Cout_pad), lambda i: (i, 0)),
        compiler_params=pltpu.CompilerParams(
            dimension_semantics=("parallel",),
            vmem_limit_bytes=32 * 1024 * 1024),
        cost_estimate=pl.CostEstimate(flops=flops, transcendentals=0,
                                      bytes_accessed=bytes_accessed),
    )(lhs, w_mat)

    # Drop the padded rows / output channels and return NCDHW.
    out = out_mat[:M, :Cout].reshape(N, D, H, W, Cout)
    return jnp.transpose(out, (0, 4, 1, 2, 3))


# --------------------------------------------------------------------------- reference

def _reference(x_ncdhw, weight, learnable_mask, theta):
    """Pure-JAX reference: same bf16 operand quantization, exact f32 conv."""
    w_eff = _effective_weight(weight, learnable_mask, theta)
    xq = x_ncdhw.astype(jnp.bfloat16).astype(jnp.float32)
    wq = w_eff.astype(jnp.bfloat16).astype(jnp.float32)
    return jax.lax.conv_general_dilated(
        xq, wq, window_strides=(1, 1, 1), padding=((1, 1), (1, 1), (1, 1)),
        dimension_numbers=("NCDHW", "OIDHW", "NCDHW"),
        precision=jax.lax.Precision.HIGHEST)


# --------------------------------------------------------------------------- main

if __name__ == "__main__":
    key = jax.random.PRNGKey(0)
    kx, kw, km, kt = jax.random.split(key, 4)

    # Small shapes consistent with the module; Cout=128 keeps the output lane-dense.
    N, Cin, Cout, D, H, W = 2, 4, 128, 16, 16, 16

    x = jax.random.normal(kx, (N, Cin, D, H, W), dtype=jnp.float32)
    fan_in = 27 * Cin
    weight = jax.random.normal(kw, (Cout, Cin, 3, 3, 3), jnp.float32) / jnp.sqrt(float(fan_in))
    learnable_mask = (jnp.ones((Cout, Cin, 1, 1, 1), jnp.float32)
                      + 0.1 * jax.random.normal(km, (Cout, Cin, 1, 1, 1), jnp.float32))
    theta = jnp.array([0.5], jnp.float32) + 0.1 * jax.random.normal(kt, (1,), jnp.float32)

    forward = jax.jit(ldc_conv3d)
    out = jax.block_until_ready(forward(x, weight, learnable_mask, theta))
    assert out.shape == (N, Cout, D, H, W), out.shape

    ref = jax.block_until_ready(_reference(x, weight, learnable_mask, theta))
    max_err = float(jnp.max(jnp.abs(out - ref)))
    assert max_err < 5e-3, f"max abs error vs reference: {max_err}"

    print("KERNEL_OK")
</pallas_src>

<mosaic_0001>
module attributes {stable_mosaic.version = 11 : i64} {
  func.func @_ldc_matmul_kernel(%arg0: i32, %arg1: memref<2048x128xbf16, #tpu.memory_space<vmem>>, %arg2: memref<128x128xbf16, #tpu.memory_space<vmem>>, %arg3: memref<2048x128xf32, #tpu.memory_space<vmem>>) attributes {dimension_semantics = [#tpu.dimension_semantics<parallel>], iteration_bounds = array<i64: 4>, scalar_prefetch = 0 : i64, scratch_operands = 0 : i64, tpu.core_type = #tpu.core_type<tc>, window_params = [{transform_indices = @transform_0, window_bounds = array<i64: 2048, 128>}, {pipeline_mode = #tpu.pipeline_mode<synchronous>, transform_indices = @transform_1, window_bounds = array<i64: 128, 128>}, {transform_indices = @transform_2, window_bounds = array<i64: 2048, 128>}]} {
    %c0 = arith.constant 0 : index
    %c0_0 = arith.constant 0 : index
    %0 = vector.load %arg1[%c0, %c0_0] : memref<2048x128xbf16, #tpu.memory_space<vmem>>, vector<2048x128xbf16>
    %c0_1 = arith.constant 0 : index
    %c0_2 = arith.constant 0 : index
    %1 = vector.load %arg2[%c0_1, %c0_2] : memref<128x128xbf16, #tpu.memory_space<vmem>>, vector<128x128xbf16>
    %cst = arith.constant dense<0.000000e+00> : vector<2048x128xf32>
    %2 = tpu.matmul %0, %1, %cst {dimension_numbers = #tpu.dot_dimension_numbers<[1], [0], [0], [1], [0, 0, 1, 1], [], []>} : vector<2048x128xbf16>, vector<128x128xbf16>, vector<2048x128xf32> -> vector<2048x128xf32>
    %c0_3 = arith.constant 0 : index
    %c0_4 = arith.constant 0 : index
    %3 = vector.load %arg3[%c0_3, %c0_4] : memref<2048x128xf32, #tpu.memory_space<vmem>>, vector<2048x128xf32>
    tpu.vector_store %arg3[%c0_3, %c0_4], %2 {strides = array<i32>} : memref<2048x128xf32, #tpu.memory_space<vmem>>, vector<2048x128xf32>,
    return
  }
  func.func @transform_0(%arg0: i32) -> (i32, i32) {
    %c0_i32 = arith.constant 0 : i32
    %c0_i32_0 = arith.constant 0 : i32
    return %arg0, %c0_i32 : i32, i32
  }
  func.func @transform_1(%arg0: i32) -> (i32, i32) {
    %c0_i32 = arith.constant 0 : i32
    %c0_i32_0 = arith.constant 0 : i32
    %c0_i32_1 = arith.constant 0 : i32
    return %c0_i32, %c0_i32_0 : i32, i32
  }
  func.func @transform_2(%arg0: i32) -> (i32, i32) {
    %c0_i32 = arith.constant 0 : i32
    %c0_i32_0 = arith.constant 0 : i32
    return %arg0, %c0_i32 : i32, i32
  }
}

</mosaic_0001>

<llo_original>
// kernel: ldc_conv3d.1
$region0: #{ldc_conv3d.1}
  #allocation0 [shape = 'u32[]', space=smem, size = 0x4, offset = 0x4, fixed_abs, tag = 'smem constant byte address 0x4 - core index']
  #allocation1 [shape = 'u32[72,128]{1,0:T(1,128)}', space=vmem, size = 0x9000, scoped, tag = 'internal scratch']
  %s0 = inlined_call_operand.vmem [shape: bf16[8192,128], index: 0, kind: input, shape index: {}]
  %s1 = inlined_call_operand.vmem [shape: bf16[128,128], index: 1, kind: input, shape index: {}]
  %s2 = inlined_call_operand.hbm [shape: f32[8192,128], index: 2, kind: output, shape index: {}]
  %s3 = sld [smem:[#allocation0]]
  $region41: #{ldc_conv3d.1} parent=0
    _
  %s5 = ssub.s32 1, %s3
  %s6 = scalar_select 0, %s5, %s3
  $region1: #{ldc_conv3d.1} parent=0
    #allocation2 [shape = 'u8[2097152]{0}', space=vmem, size = 0x200000, scoped, tag = 'output window, operand 0']
    #allocation3 [shape = 's32[2]{0}', space=sflag, size = 0x8, scoped, tag = 'scoped memory for ldc_conv3d.1']
    %7 = vsyncpa [#allocation3], 0
    %s8 = scalar_lea.sflag [#allocation3], 1
    %9 = vsyncpa %s8, 0
    loop: start=0, step=1, limit=6
    $region2: #{ldc_conv3d.1} parent=1 // loop_pre_header
      _
    $region3: #{ldc_conv3d.1} parent=1 // loop_header
      %s11 = sphi 0, %s15
      %p12 = scmp.ge.s32.totalorder %s11, 6
      %s21 = sphi 0, %s23
      %s24 = sphi 0, %s21
      %s25 = sphi 0, %s24
      %s41 = sphi 0, %s25
      %s45 = sphi 0, %s45
      %s47 = sphi 0, %s45
      %s48 = sphi 0, %s47
      %s62 = sphi 0, %s48
      %s68 = sphi 0, %s70
      %s71 = sphi 0, %s68
      %s72 = sphi 0, %s71
      %s88 = sphi 0, %s72
    $region4: #{ldc_conv3d.1} parent=1 // loop_header_branch
      %14 = sbr.rel (%p12) target = $region8
    $region5: #{ldc_conv3d.1} parent=1 // loop_body
      %s16 = ssub.s32 %s11, 1
      %s17 = ssub.s32 %s11, 2
      %s18 = sadd.s32 %s11, 1
      %s19 = ssub.s32 %s11, %s18
      %p20 = scmp.eq.s32.totalorder %s19, 0
      %s22 = sadd.s32 %s21, 1
      %s23 = scalar_select %p20, %s21, %s22
      %p26 = pneg %p20
      %p27 = scmp.eq.s32.totalorder %s11, 3
      %p28 = por %p26, %p27
      %p29 = scmp.ne.s32.totalorder %s21, %s24
      %p30 = scmp.eq.s32.totalorder %s11, 0
      %p31 = por %p29, %p30
      %p32 = scmp.ne.s32.totalorder %s21, %s24
      %p33 = scmp.eq.s32.totalorder %s16, 3
      %p34 = por %p32, %p33
      %p35 = scmp.ne.s32.totalorder %s24, %s25
      %p36 = scmp.eq.s32.totalorder %s16, 0
      %p37 = por %p35, %p36
      %p38 = scmp.ne.s32.totalorder %s24, %s25
      %p39 = scmp.eq.s32.totalorder %s17, 3
      %p40 = por %p38, %p39
      %p42 = scmp.ne.s32.totalorder %s25, %s41
      %p43 = scmp.eq.s32.totalorder %s17, 0
      %p44 = por %p42, %p43
      %s46 = sadd.s32 %s45, 1
      %p49 = scmp.eq.s32.totalorder %s11, 3
      %p50 = scmp.ne.s32.totalorder %s45, %s47
      %p51 = scmp.eq.s32.totalorder %s11, 0
      %p52 = por %p50, %p51
      %p53 = scmp.ne.s32.totalorder %s45, %s47
      %p54 = scmp.eq.s32.totalorder %s16, 3
      %p55 = por %p53, %p54
      %p56 = scmp.ne.s32.totalorder %s47, %s48
      %p57 = scmp.eq.s32.totalorder %s16, 0
      %p58 = por %p56, %p57
      %p59 = scmp.ne.s32.totalorder %s47, %s48
      %p60 = scmp.eq.s32.totalorder %s17, 3
      %p61 = por %p59, %p60
      %p63 = scmp.ne.s32.totalorder %s48, %s62
      %p64 = scmp.eq.s32.totalorder %s17, 0
      %p65 = por %p63, %p64
      %s66 = ssub.s32 %s11, %s18
      %p67 = scmp.eq.s32.totalorder %s66, 0
      %s69 = sadd.s32 %s68, 1
      %s70 = scalar_select %p67, %s68, %s69
      %p73 = pneg %p67
      %p74 = scmp.eq.s32.totalorder %s11, 3
      %p75 = por %p73, %p74
      %p76 = scmp.ne.s32.totalorder %s68, %s71
      %p77 = scmp.eq.s32.totalorder %s11, 0
      %p78 = por %p76, %p77
      %p79 = scmp.ne.s32.totalorder %s68, %s71
      %p80 = scmp.eq.s32.totalorder %s16, 3
      %p81 = por %p79, %p80
      %p82 = scmp.ne.s32.totalorder %s71, %s72
      %p83 = scmp.eq.s32.totalorder %s16, 0
      %p84 = por %p82, %p83
      %p85 = scmp.ne.s32.totalorder %s71, %s72
      %p86 = scmp.eq.s32.totalorder %s17, 3
      %p87 = por %p85, %p86
      %p89 = scmp.ne.s32.totalorder %s72, %s88
      %p90 = scmp.eq.s32.totalorder %s17, 0
      %p91 = por %p89, %p90
      %p92 = scmp.le.s32.totalorder 1, %s11
      %p93 = scmp.lt.s32.totalorder %s11, 5
      %p94 = pnand %p92, %p93
      %p95 = pneg %p94
      // Predicated region
      $region9: #{ldc_conv3d.1} parent=5 // pred_check
        _
      $region10: #{ldc_conv3d.1} parent=5 // pred_check_branch
        %97 = sbr.rel (%p94) target = $region12
      $region11: #{ldc_conv3d.1} parent=5 // pred_region
        %s98 = ssub.s32 %s11, 1
        // Predicated region
        $region13: #{ldc_conv3d.1} parent=11 // pred_check
          %p99 = pneg %p58
        $region14: #{ldc_conv3d.1} parent=11 // pred_check_branch
          %101 = sbr.rel (%p99) target = $region16
        $region15: #{ldc_conv3d.1} parent=11 // pred_region
          _
        $region16: #{ldc_conv3d.1} parent=11 // pred_fallthru
          _
      $region12: #{ldc_conv3d.1} parent=5 // pred_fallthru
        _
      %p102 = scmp.lt.s32.totalorder %s11, 4
      // Predicated region
      $region17: #{ldc_conv3d.1} parent=5 // pred_check
        %p103 = pneg %p102
      $region18: #{ldc_conv3d.1} parent=5 // pred_check_branch
        %105 = sbr.rel (%p103) target = $region20
      $region19: #{ldc_conv3d.1} parent=5 // pred_region
        // Predicated region
        $region21: #{ldc_conv3d.1} parent=19 // pred_check
          %p106 = pneg %p31
        $region22: #{ldc_conv3d.1} parent=19 // pred_check_branch
          %108 = sbr.rel (%p106) target = $region24
        $region23: #{ldc_conv3d.1} parent=19 // pred_region
          %s109 = smul.u32 256, %s11
          %p110 = scmp.lt.s32.totalorder %s109, 1023
          %s111 = scalar_select %p110, %s109, 1023
          %s112 = smul.addr %s111, 4
          %s113 = scalar_lea.vmem %s0, %s112
          %s114 = smul.u32 256, %s11
        $region24: #{ldc_conv3d.1} parent=19 // pred_fallthru
          _
      $region20: #{ldc_conv3d.1} parent=5 // pred_fallthru
        _
      %p115 = scmp.le.s32.totalorder 1, %s11
      %p116 = scmp.lt.s32.totalorder %s11, 5
      %p117 = pnand %p115, %p116
      %p118 = pneg %p117
      // Predicated region
      $region25: #{ldc_conv3d.1} parent=5 // pred_check
        _
      $region26: #{ldc_conv3d.1} parent=5 // pred_check_branch
        %120 = sbr.rel (%p117) target = $region28
      $region27: #{ldc_conv3d.1} parent=5 // pred_region
        %s121 = ssub.s32 %s11, 1
        %s122 = smul.u32 256, %s16
        %p123 = scmp.lt.s32.totalorder %s122, 1023
        %s124 = scalar_select %p123, %s122, 1023
        %s125 = smul.addr %s124, 4
        %s126 = scalar_lea.vmem %s0, %s125
        %p127 = pneg %p37
        %p128 = pneg %p34
        %p129 = pneg %p58
        %p130 = pneg %p55
        %p131 = pneg %p84
        %p132 = pneg %p81
        %s133 = sand.u32 %s71, 1
        %s134 = scalar_lea.sflag [#allocation3], %s133
        %s135 = sand.u32 %s71, 1
        %s136 = smul.addr %s135, 2048
        %s137 = scalar_lea.vmem [#allocation2], %s136
        %s138 = smul.u32 256, %s16
        %p139 = scmp.lt.s32.totalorder %s138, 1023
        %s140 = scalar_select %p139, %s138, 1023
        %s141 = smul.addr %s140, 4
        %s142 = scalar_lea.vmem %s0, %s141
        %s143 = smul.u32 256, %s16
        %s144 = smul.u32 256, %s16
        %v145 = vld [vmem:[%s142] sm:$0xf]
        %v146 = vld [vmem:[%s142 + $0x4] sm:$0xf]
        %v147 = vld [vmem:[%s142 + $0x8] sm:$0xf]
        %v148 = vld [vmem:[%s142 + $0xc] sm:$0xf]
        %v149 = vld [vmem:[%s142 + $0x10] sm:$0xf]
        %v150 = vld [vmem:[%s142 + $0x14] sm:$0xf]
        %v151 = vld [vmem:[%s142 + $0x18] sm:$0xf]
        %v152 = vld [vmem:[%s142 + $0x1c] sm:$0xf]
        %v153 = vld [vmem:[%s142 + $0x20] sm:$0xf]
        %v154 = vld [vmem:[%s142 + $0x24] sm:$0xf]
        %v155 = vld [vmem:[%s142 + $0x28] sm:$0xf]
        %v156 = vld [vmem:[%s142 + $0x2c] sm:$0xf]
        %v157 = vld [vmem:[%s142 + $0x30] sm:$0xf]
        %v158 = vld [vmem:[%s142 + $0x34] sm:$0xf]
        %v159 = vld [vmem:[%s142 + $0x38] sm:$0xf]
        %v160 = vld [vmem:[%s142 + $0x3c] sm:$0xf]
        %v161 = vld [vmem:[%s142 + $0x40] sm:$0xf]
        %v162 = vld [vmem:[%s142 + $0x44] sm:$0xf]
        %v163 = vld [vmem:[%s142 + $0x48] sm:$0xf]
        %v164 = vld [vmem:[%s142 + $0x4c] sm:$0xf]
        %v165 = vld [vmem:[%s142 + $0x50] sm:$0xf]
        %v166 = vld [vmem:[%s142 + $0x54] sm:$0xf]
        %v167 = vld [vmem:[%s142 + $0x58] sm:$0xf]
        %v168 = vld [vmem:[%s142 + $0x5c] sm:$0xf]
        %v169 = vld [vmem:[%s142 + $0x60] sm:$0xf]
        %v170 = vld [vmem:[%s142 + $0x64] sm:$0xf]
        %v171 = vld [vmem:[%s142 + $0x68] sm:$0xf]
        %v172 = vld [vmem:[%s142 + $0x6c] sm:$0xf]
        %v173 = vld [vmem:[%s142 + $0x70] sm:$0xf]
        %v174 = vld [vmem:[%s142 + $0x74] sm:$0xf]
        %v175 = vld [vmem:[%s142 + $0x78] sm:$0xf]
        %v176 = vld [vmem:[%s142 + $0x7c] sm:$0xf]
        %v177 = vld [vmem:[%s142 + $0x80] sm:$0xf]
        %v178 = vld [vmem:[%s142 + $0x84] sm:$0xf]
        %v179 = vld [vmem:[%s142 + $0x88] sm:$0xf]
        %v180 = vld [vmem:[%s142 + $0x8c] sm:$0xf]
        %v181 = vld [vmem:[%s142 + $0x90] sm:$0xf]
        %v182 = vld [vmem:[%s142 + $0x94] sm:$0xf]
        %v183 = vld [vmem:[%s142 + $0x98] sm:$0xf]
        %v184 = vld [vmem:[%s142 + $0x9c] sm:$0xf]
        %v185 = vld [vmem:[%s142 + $0xa0] sm:$0xf]
        %v186 = vld [vmem:[%s142 + $0xa4] sm:$0xf]
        %v187 = vld [vmem:[%s142 + $0xa8] sm:$0xf]
        %v188 = vld [vmem:[%s142 + $0xac] sm:$0xf]
        %v189 = vld [vmem:[%s142 + $0xb0] sm:$0xf]
        %v190 = vld [vmem:[%s142 + $0xb4] sm:$0xf]
        %v191 = vld [vmem:[%s142 + $0xb8] sm:$0xf]
        %v192 = vld [vmem:[%s142 + $0xbc] sm:$0xf]
        %v193 = vld [vmem:[%s142 + $0xc0] sm:$0xf]
        %v194 = vld [vmem:[%s142 + $0xc4] sm:$0xf]
        %v195 = vld [vmem:[%s142 + $0xc8] sm:$0xf]
        %v196 = vld [vmem:[%s142 + $0xcc] sm:$0xf]
        %v197 = vld [vmem:[%s142 + $0xd0] sm:$0xf]
        %v198 = vld [vmem:[%s142 + $0xd4] sm:$0xf]
        %v199 = vld [vmem:[%s142 + $0xd8] sm:$0xf]
        %v200 = vld [vmem:[%s142 + $0xdc] sm:$0xf]
        %v201 = vld [vmem:[%s142 + $0xe0] sm:$0xf]
        %v202 = vld [vmem:[%s142 + $0xe4] sm:$0xf]
        %v203 = vld [vmem:[%s142 + $0xe8] sm:$0xf]
        %v204 = vld [vmem:[%s142 + $0xec] sm:$0xf]
        %v205 = vld [vmem:[%s142 + $0xf0] sm:$0xf]
        %v206 = vld [vmem:[%s142 + $0xf4] sm:$0xf]
        %v207 = vld [vmem:[%s142 + $0xf8] sm:$0xf]
        %v208 = vld [vmem:[%s142 + $0xfc] sm:$0xf]
        %v209 = vld [vmem:[%s142 + $0x100] sm:$0xf]
        %v210 = vld [vmem:[%s142 + $0x104] sm:$0xf]
        %v211 = vld [vmem:[%s142 + $0x108] sm:$0xf]
        %v212 = vld [vmem:[%s142 + $0x10c] sm:$0xf]
        %v213 = vld [vmem:[%s142 + $0x110] sm:$0xf]
        %v214 = vld [vmem:[%s142 + $0x114] sm:$0xf]
        %v215 = vld [vmem:[%s142 + $0x118] sm:$0xf]
        %v216 = vld [vmem:[%s142 + $0x11c] sm:$0xf]
        %v217 = vld [vmem:[%s142 + $0x120] sm:$0xf]
        %v218 = vld [vmem:[%s142 + $0x124] sm:$0xf]
        %v219 = vld [vmem:[%s142 + $0x128] sm:$0xf]
        %v220 = vld [vmem:[%s142 + $0x12c] sm:$0xf]
        %v221 = vld [vmem:[%s142 + $0x130] sm:$0xf]
        %v222 = vld [vmem:[%s142 + $0x134] sm:$0xf]
        %v223 = vld [vmem:[%s142 + $0x138] sm:$0xf]
        %v224 = vld [vmem:[%s142 + $0x13c] sm:$0xf]
        %v225 = vld [vmem:[%s142 + $0x140] sm:$0xf]
        %v226 = vld [vmem:[%s142 + $0x144] sm:$0xf]
        %v227 = vld [vmem:[%s142 + $0x148] sm:$0xf]
        %v228 = vld [vmem:[%s142 + $0x14c] sm:$0xf]
        %v229 = vld [vmem:[%s142 + $0x150] sm:$0xf]
        %v230 = vld [vmem:[%s142 + $0x154] sm:$0xf]
        %v231 = vld [vmem:[%s142 + $0x158] sm:$0xf]
        %v232 = vld [vmem:[%s142 + $0x15c] sm:$0xf]
        %v233 = vld [vmem:[%s142 + $0x160] sm:$0xf]
        %v234 = vld [vmem:[%s142 + $0x164] sm:$0xf]
        %v235 = vld [vmem:[%s142 + $0x168] sm:$0xf]
        %v236 = vld [vmem:[%s142 + $0x16c] sm:$0xf]
        %v237 = vld [vmem:[%s142 + $0x170] sm:$0xf]
        %v238 = vld [vmem:[%s142 + $0x174] sm:$0xf]
        %v239 = vld [vmem:[%s142 + $0x178] sm:$0xf]
        %v240 = vld [vmem:[%s142 + $0x17c] sm:$0xf]
        %v241 = vld [vmem:[%s142 + $0x180] sm:$0xf]
        %v242 = vld [vmem:[%s142 + $0x184] sm:$0xf]
        %v243 = vld [vmem:[%s142 + $0x188] sm:$0xf]
        %v244 = vld [vmem:[%s142 + $0x18c] sm:$0xf]
        %v245 = vld [vmem:[%s142 + $0x190] sm:$0xf]
        %v246 = vld [vmem:[%s142 + $0x194] sm:$0xf]
        %v247 = vld [vmem:[%s142 + $0x198] sm:$0xf]
        %v248 = vld [vmem:[%s142 + $0x19c] sm:$0xf]
        %v249 = vld [vmem:[%s142 + $0x1a0] sm:$0xf]
        %v250 = vld [vmem:[%s142 + $0x1a4] sm:$0xf]
        %v251 = vld [vmem:[%s142 + $0x1a8] sm:$0xf]
        %v252 = vld [vmem:[%s142 + $0x1ac] sm:$0xf]
        %v253 = vld [vmem:[%s142 + $0x1b0] sm:$0xf]
        %v254 = vld [vmem:[%s142 + $0x1b4] sm:$0xf]
        %v255 = vld [vmem:[%s142 + $0x1b8] sm:$0xf]
        %v256 = vld [vmem:[%s142 + $0x1bc] sm:$0xf]
        %v257 = vld [vmem:[%s142 + $0x1c0] sm:$0xf]
        %v258 = vld [vmem:[%s142 + $0x1c4] sm:$0xf]
        %v259 = vld [vmem:[%s142 + $0x1c8] sm:$0xf]
        %v260 = vld [vmem:[%s142 + $0x1cc] sm:$0xf]
        %v261 = vld [vmem:[%s142 + $0x1d0] sm:$0xf]
        %v262 = vld [vmem:[%s142 + $0x1d4] sm:$0xf]
        %v263 = vld [vmem:[%s142 + $0x1d8] sm:$0xf]
        %v264 = vld [vmem:[%s142 + $0x1dc] sm:$0xf]
        %v265 = vld [vmem:[%s142 + $0x1e0] sm:$0xf]
        %v266 = vld [vmem:[%s142 + $0x1e4] sm:$0xf]
        %v267 = vld [vmem:[%s142 + $0x1e8] sm:$0xf]
        %v268 = vld [vmem:[%s142 + $0x1ec] sm:$0xf]
        %v269 = vld [vmem:[%s142 + $0x1f0] sm:$0xf]
        %v270 = vld [vmem:[%s142 + $0x1f4] sm:$0xf]
        %v271 = vld [vmem:[%s142 + $0x1f8] sm:$0xf]
        %v272 = vld [vmem:[%s142 + $0x1fc] sm:$0xf]
        %v273 = vld [vmem:[%s142 + $0x200] sm:$0xf]
        %v274 = vld [vmem:[%s142 + $0x204] sm:$0xf]
        %v275 = vld [vmem:[%s142 + $0x208] sm:$0xf]
        %v276 = vld [vmem:[%s142 + $0x20c] sm:$0xf]
        %v277 = vld [vmem:[%s142 + $0x210] sm:$0xf]
        %v278 = vld [vmem:[%s142 + $0x214] sm:$0xf]
        %v279 = vld [vmem:[%s142 + $0x218] sm:$0xf]
        %v280 = vld [vmem:[%s142 + $0x21c] sm:$0xf]
        %v281 = vld [vmem:[%s142 + $0x220] sm:$0xf]
        %v282 = vld [vmem:[%s142 + $0x224] sm:$0xf]
        %v283 = vld [vmem:[%s142 + $0x228] sm:$0xf]
        %v284 = vld [vmem:[%s142 + $0x22c] sm:$0xf]
        %v285 = vld [vmem:[%s142 + $0x230] sm:$0xf]
        %v286 = vld [vmem:[%s142 + $0x234] sm:$0xf]
        %v287 = vld [vmem:[%s142 + $0x238] sm:$0xf]
        %v288 = vld [vmem:[%s142 + $0x23c] sm:$0xf]
        %v289 = vld [vmem:[%s142 + $0x240] sm:$0xf]
        %v290 = vld [vmem:[%s142 + $0x244] sm:$0xf]
        %v291 = vld [vmem:[%s142 + $0x248] sm:$0xf]
        %v292 = vld [vmem:[%s142 + $0x24c] sm:$0xf]
        %v293 = vld [vmem:[%s142 + $0x250] sm:$0xf]
        %v294 = vld [vmem:[%s142 + $0x254] sm:$0xf]
        %v295 = vld [vmem:[%s142 + $0x258] sm:$0xf]
        %v296 = vld [vmem:[%s142 + $0x25c] sm:$0xf]
        %v297 = vld [vmem:[%s142 + $0x260] sm:$0xf]
        %v298 = vld [vmem:[%s142 + $0x264] sm:$0xf]
        %v299 = vld [vmem:[%s142 + $0x268] sm:$0xf]
        %v300 = vld [vmem:[%s142 + $0x26c] sm:$0xf]
        %v301 = vld [vmem:[%s142 + $0x270] sm:$0xf]
        %v302 = vld [vmem:[%s142 + $0x274] sm:$0xf]
        %v303 = vld [vmem:[%s142 + $0x278] sm:$0xf]
        %v304 = vld [vmem:[%s142 + $0x27c] sm:$0xf]
        %v305 = vld [vmem:[%s142 + $0x280] sm:$0xf]
        %v306 = vld [vmem:[%s142 + $0x284] sm:$0xf]
        %v307 = vld [vmem:[%s142 + $0x288] sm:$0xf]
        %v308 = vld [vmem:[%s142 + $0x28c] sm:$0xf]
        %v309 = vld [vmem:[%s142 + $0x290] sm:$0xf]
        %v310 = vld [vmem:[%s142 + $0x294] sm:$0xf]
        %v311 = vld [vmem:[%s142 + $0x298] sm:$0xf]
        %v312 = vld [vmem:[%s142 + $0x29c] sm:$0xf]
        %v313 = vld [vmem:[%s142 + $0x2a0] sm:$0xf]
        %v314 = vld [vmem:[%s142 + $0x2a4] sm:$0xf]
        %v315 = vld [vmem:[%s142 + $0x2a8] sm:$0xf]
        %v316 = vld [vmem:[%s142 + $0x2ac] sm:$0xf]
        %v317 = vld [vmem:[%s142 + $0x2b0] sm:$0xf]
        %v318 = vld [vmem:[%s142 + $0x2b4] sm:$0xf]
        %v319 = vld [vmem:[%s142 + $0x2b8] sm:$0xf]
        %v320 = vld [vmem:[%s142 + $0x2bc] sm:$0xf]
        %v321 = vld [vmem:[%s142 + $0x2c0] sm:$0xf]
        %v322 = vld [vmem:[%s142 + $0x2c4] sm:$0xf]
        %v323 = vld [vmem:[%s142 + $0x2c8] sm:$0xf]
        %v324 = vld [vmem:[%s142 + $0x2cc] sm:$0xf]
        %v325 = vld [vmem:[%s142 + $0x2d0] sm:$0xf]
        %v326 = vld [vmem:[%s142 + $0x2d4] sm:$0xf]
        %v327 = vld [vmem:[%s142 + $0x2d8] sm:$0xf]
        %v328 = vld [vmem:[%s142 + $0x2dc] sm:$0xf]
        %v329 = vld [vmem:[%s142 + $0x2e0] sm:$0xf]
        %v330 = vld [vmem:[%s142 + $0x2e4] sm:$0xf]
        %v331 = vld [vmem:[%s142 + $0x2e8] sm:$0xf]
        %v332 = vld [vmem:[%s142 + $0x2ec] sm:$0xf]
        %v333 = vld [vmem:[%s142 + $0x2f0] sm:$0xf]
        %v334 = vld [vmem:[%s142 + $0x2f4] sm:$0xf]
        %v335 = vld [vmem:[%s142 + $0x2f8] sm:$0xf]
        %v336 = vld [vmem:[%s142 + $0x2fc] sm:$0xf]
        %v337 = vld [vmem:[%s142 + $0x300] sm:$0xf]
        %v338 = vld [vmem:[%s142 + $0x304] sm:$0xf]
        %v339 = vld [vmem:[%s142 + $0x308] sm:$0xf]
        %v340 = vld [vmem:[%s142 + $0x30c] sm:$0xf]
        %v341 = vld [vmem:[%s142 + $0x310] sm:$0xf]
        %v342 = vld [vmem:[%s142 + $0x314] sm:$0xf]
        %v343 = vld [vmem:[%s142 + $0x318] sm:$0xf]
        %v344 = vld [vmem:[%s142 + $0x31c] sm:$0xf]
        %v345 = vld [vmem:[%s142 + $0x320] sm:$0xf]
        %v346 = vld [vmem:[%s142 + $0x324] sm:$0xf]
        %v347 = vld [vmem:[%s142 + $0x328] sm:$0xf]
        %v348 = vld [vmem:[%s142 + $0x32c] sm:$0xf]
        %v349 = vld [vmem:[%s142 + $0x330] sm:$0xf]
        %v350 = vld [vmem:[%s142 + $0x334] sm:$0xf]
        %v351 = vld [vmem:[%s142 + $0x338] sm:$0xf]
        %v352 = vld [vmem:[%s142 + $0x33c] sm:$0xf]
        %v353 = vld [vmem:[%s142 + $0x340] sm:$0xf]
        %v354 = vld [vmem:[%s142 + $0x344] sm:$0xf]
        %v355 = vld [vmem:[%s142 + $0x348] sm:$0xf]
        %v356 = vld [vmem:[%s142 + $0x34c] sm:$0xf]
        %v357 = vld [vmem:[%s142 + $0x350] sm:$0xf]
        %v358 = vld [vmem:[%s142 + $0x354] sm:$0xf]
        %v359 = vld [vmem:[%s142 + $0x358] sm:$0xf]
        %v360 = vld [vmem:[%s142 + $0x35c] sm:$0xf]
        %v361 = vld [vmem:[%s142 + $0x360] sm:$0xf]
        %v362 = vld [vmem:[%s142 + $0x364] sm:$0xf]
        %v363 = vld [vmem:[%s142 + $0x368] sm:$0xf]
        %v364 = vld [vmem:[%s142 + $0x36c] sm:$0xf]
        %v365 = vld [vmem:[%s142 + $0x370] sm:$0xf]
        %v366 = vld [vmem:[%s142 + $0x374] sm:$0xf]
        %v367 = vld [vmem:[%s142 + $0x378] sm:$0xf]
        %v368 = vld [vmem:[%s142 + $0x37c] sm:$0xf]
        %v369 = vld [vmem:[%s142 + $0x380] sm:$0xf]
        %v370 = vld [vmem:[%s142 + $0x384] sm:$0xf]
        %v371 = vld [vmem:[%s142 + $0x388] sm:$0xf]
        %v372 = vld [vmem:[%s142 + $0x38c] sm:$0xf]
        %v373 = vld [vmem:[%s142 + $0x390] sm:$0xf]
        %v374 = vld [vmem:[%s142 + $0x394] sm:$0xf]
        %v375 = vld [vmem:[%s142 + $0x398] sm:$0xf]
        %v376 = vld [vmem:[%s142 + $0x39c] sm:$0xf]
        %v377 = vld [vmem:[%s142 + $0x3a0] sm:$0xf]
        %v378 = vld [vmem:[%s142 + $0x3a4] sm:$0xf]
        %v379 = vld [vmem:[%s142 + $0x3a8] sm:$0xf]
        %v380 = vld [vmem:[%s142 + $0x3ac] sm:$0xf]
        %v381 = vld [vmem:[%s142 + $0x3b0] sm:$0xf]
        %v382 = vld [vmem:[%s142 + $0x3b4] sm:$0xf]
        %v383 = vld [vmem:[%s142 + $0x3b8] sm:$0xf]
        %v384 = vld [vmem:[%s142 + $0x3bc] sm:$0xf]
        %v385 = vld [vmem:[%s142 + $0x3c0] sm:$0xf]
        %v386 = vld [vmem:[%s142 + $0x3c4] sm:$0xf]
        %v387 = vld [vmem:[%s142 + $0x3c8] sm:$0xf]
        %v388 = vld [vmem:[%s142 + $0x3cc] sm:$0xf]
        %v389 = vld [vmem:[%s142 + $0x3d0] sm:$0xf]
        %v390 = vld [vmem:[%s142 + $0x3d4] sm:$0xf]
        %v391 = vld [vmem:[%s142 + $0x3d8] sm:$0xf]
        %v392 = vld [vmem:[%s142 + $0x3dc] sm:$0xf]
        %v393 = vld [vmem:[%s142 + $0x3e0] sm:$0xf]
        %v394 = vld [vmem:[%s142 + $0x3e4] sm:$0xf]
        %v395 = vld [vmem:[%s142 + $0x3e8] sm:$0xf]
        %v396 = vld [vmem:[%s142 + $0x3ec] sm:$0xf]
        %v397 = vld [vmem:[%s142 + $0x3f0] sm:$0xf]
        %v398 = vld [vmem:[%s142 + $0x3f4] sm:$0xf]
        %v399 = vld [vmem:[%s142 + $0x3f8] sm:$0xf]
        %v400 = vld [vmem:[%s142 + $0x3fc] sm:$0xf]
        %v401 = vld [vmem:[%s1] sm:$0xf]
        %v402 = vld [vmem:[%s1 + $0x4] sm:$0xf]
        %v403 = vld [vmem:[%s1 + $0x8] sm:$0xf]
        %v404 = vld [vmem:[%s1 + $0xc] sm:$0xf]
        %v405 = vld [vmem:[%s1 + $0x10] sm:$0xf]
        %v406 = vld [vmem:[%s1 + $0x14] sm:$0xf]
        %v407 = vld [vmem:[%s1 + $0x18] sm:$0xf]
        %v408 = vld [vmem:[%s1 + $0x1c] sm:$0xf]
        %v409 = vld [vmem:[%s1 + $0x20] sm:$0xf]
        %v410 = vld [vmem:[%s1 + $0x24] sm:$0xf]
        %v411 = vld [vmem:[%s1 + $0x28] sm:$0xf]
        %v412 = vld [vmem:[%s1 + $0x2c] sm:$0xf]
        %v413 = vld [vmem:[%s1 + $0x30] sm:$0xf]
        %v414 = vld [vmem:[%s1 + $0x34] sm:$0xf]
        %v415 = vld [vmem:[%s1 + $0x38] sm:$0xf]
        %v416 = vld [vmem:[%s1 + $0x3c] sm:$0xf]
        %v673 = vunpack.c.l.b16 %v145
        %v674 = vunpack.c.l.b16 %v146
        %v675 = vunpack.c.l.b16 %v147
        %v676 = vunpack.c.l.b16 %v148
        %v677 = vunpack.c.l.b16 %v149
        %v678 = vunpack.c.l.b16 %v150
        %v679 = vunpack.c.l.b16 %v151
        %v680 = vunpack.c.l.b16 %v152
        %v681 = vunpack.c.l.b16 %v153
        %v682 = vunpack.c.l.b16 %v154
        %v683 = vunpack.c.l.b16 %v155
        %v684 = vunpack.c.l.b16 %v156
        %v685 = vunpack.c.l.b16 %v157
        %v686 = vunpack.c.l.b16 %v158
        %v687 = vunpack.c.l.b16 %v159
        %v688 = vunpack.c.l.b16 %v160
        %v689 = vunpack.c.l.b16 %v161
        %v690 = vunpack.c.l.b16 %v162
        %v691 = vunpack.c.l.b16 %v163
        %v692 = vunpack.c.l.b16 %v164
        %v693 = vunpack.c.l.b16 %v165
        %v694 = vunpack.c.l.b16 %v166
        %v695 = vunpack.c.l.b16 %v167
        %v696 = vunpack.c.l.b16 %v168
        %v697 = vunpack.c.l.b16 %v169
        %v698 = vunpack.c.l.b16 %v170
        %v699 = vunpack.c.l.b16 %v171
        %v700 = vunpack.c.l.b16 %v172
        %v701 = vunpack.c.l.b16 %v173
        %v702 = vunpack.c.l.b16 %v174
        %v703 = vunpack.c.l.b16 %v175
        %v704 = vunpack.c.l.b16 %v176
        %v705 = vunpack.c.l.b16 %v177
        %v706 = vunpack.c.l.b16 %v178
        %v707 = vunpack.c.l.b16 %v179
        %v708 = vunpack.c.l.b16 %v180
        %v709 = vunpack.c.l.b16 %v181
        %v710 = vunpack.c.l.b16 %v182
        %v711 = vunpack.c.l.b16 %v183
        %v712 = vunpack.c.l.b16 %v184
        %v713 = vunpack.c.l.b16 %v185
        %v714 = vunpack.c.l.b16 %v186
        %v715 = vunpack.c.l.b16 %v187
        %v716 = vunpack.c.l.b16 %v188
        %v717 = vunpack.c.l.b16 %v189
        %v718 = vunpack.c.l.b16 %v190
        %v719 = vunpack.c.l.b16 %v191
        %v720 = vunpack.c.l.b16 %v192
        %v721 = vunpack.c.l.b16 %v193
        %v722 = vunpack.c.l.b16 %v194
        %v723 = vunpack.c.l.b16 %v195
        %v724 = vunpack.c.l.b16 %v196
        %v725 = vunpack.c.l.b16 %v197
        %v726 = vunpack.c.l.b16 %v198
        %v727 = vunpack.c.l.b16 %v199
        %v728 = vunpack.c.l.b16 %v200
        %v729 = vunpack.c.l.b16 %v201
        %v730 = vunpack.c.l.b16 %v202
        %v731 = vunpack.c.l.b16 %v203
        %v732 = vunpack.c.l.b16 %v204
        %v733 = vunpack.c.l.b16 %v205
        %v734 = vunpack.c.l.b16 %v206
        %v735 = vunpack.c.l.b16 %v207
        %v736 = vunpack.c.l.b16 %v208
        %v737 = vunpack.c.l.b16 %v209
        %v738 = vunpack.c.l.b16 %v210
        %v739 = vunpack.c.l.b16 %v211
        %v740 = vunpack.c.l.b16 %v212
        %v741 = vunpack.c.l.b16 %v213
        %v742 = vunpack.c.l.b16 %v214
        %v743 = vunpack.c.l.b16 %v215
        %v744 = vunpack.c.l.b16 %v216
        %v745 = vunpack.c.l.b16 %v217
        %v746 = vunpack.c.l.b16 %v218
        %v747 = vunpack.c.l.b16 %v219
        %v748 = vunpack.c.l.b16 %v220
        %v749 = vunpack.c.l.b16 %v221
        %v750 = vunpack.c.l.b16 %v222
        %v751 = vunpack.c.l.b16 %v223
        %v752 = vunpack.c.l.b16 %v224
        %v753 = vunpack.c.l.b16 %v225
        %v754 = vunpack.c.l.b16 %v226
        %v755 = vunpack.c.l.b16 %v227
        %v756 = vunpack.c.l.b16 %v228
        %v757 = vunpack.c.l.b16 %v229
        %v758 = vunpack.c.l.b16 %v230
        %v759 = vunpack.c.l.b16 %v231
        %v760 = vunpack.c.l.b16 %v232
        %v761 = vunpack.c.l.b16 %v233
        %v762 = vunpack.c.l.b16 %v234
        %v763 = vunpack.c.l.b16 %v235
        %v764 = vunpack.c.l.b16 %v236
        %v765 = vunpack.c.l.b16 %v237
        %v766 = vunpack.c.l.b16 %v238
        %v767 = vunpack.c.l.b16 %v239
        %v768 = vunpack.c.l.b16 %v240
        %v769 = vunpack.c.l.b16 %v241
        %v770 = vunpack.c.l.b16 %v242
        %v771 = vunpack.c.l.b16 %v243
        %v772 = vunpack.c.l.b16 %v244
        %v773 = vunpack.c.l.b16 %v245
        %v774 = vunpack.c.l.b16 %v246
        %v775 = vunpack.c.l.b16 %v247
        %v776 = vunpack.c.l.b16 %v248
        %v777 = vunpack.c.l.b16 %v249
        %v778 = vunpack.c.l.b16 %v250
        %v779 = vunpack.c.l.b16 %v251
        %v780 = vunpack.c.l.b16 %v252
        %v781 = vunpack.c.l.b16 %v253
        %v782 = vunpack.c.l.b16 %v254
        %v783 = vunpack.c.l.b16 %v255
        %v784 = vunpack.c.l.b16 %v256
        %v785 = vunpack.c.l.b16 %v257
        %v786 = vunpack.c.l.b16 %v258
        %v787 = vunpack.c.l.b16 %v259
        %v788 = vunpack.c.l.b16 %v260
        %v789 = vunpack.c.l.b16 %v261
        %v790 = vunpack.c.l.b16 %v262
        %v791 = vunpack.c.l.b16 %v263
        %v792 = vunpack.c.l.b16 %v264
        %v793 = vunpack.c.l.b16 %v265
        %v794 = vunpack.c.l.b16 %v266
        %v795 = vunpack.c.l.b16 %v267
        %v796 = vunpack.c.l.b16 %v268
        %v797 = vunpack.c.l.b16 %v269
        %v798 = vunpack.c.l.b16 %v270
        %v799 = vunpack.c.l.b16 %v271
        %v800 = vunpack.c.l.b16 %v272
        %v801 = vunpack.c.l.b16 %v273
        %v802 = vunpack.c.l.b16 %v274
        %v803 = vunpack.c.l.b16 %v275
        %v804 = vunpack.c.l.b16 %v276
        %v805 = vunpack.c.l.b16 %v277
        %v806 = vunpack.c.l.b16 %v278
        %v807 = vunpack.c.l.b16 %v279
        %v808 = vunpack.c.l.b16 %v280
        %v809 = vunpack.c.l.b16 %v281
        %v810 = vunpack.c.l.b16 %v282
        %v811 = vunpack.c.l.b16 %v283
        %v812 = vunpack.c.l.b16 %v284
        %v813 = vunpack.c.l.b16 %v285
        %v814 = vunpack.c.l.b16 %v286
        %v815 = vunpack.c.l.b16 %v287
        %v816 = vunpack.c.l.b16 %v288
        %v817 = vunpack.c.l.b16 %v289
        %v818 = vunpack.c.l.b16 %v290
        %v819 = vunpack.c.l.b16 %v291
        %v820 = vunpack.c.l.b16 %v292
        %v821 = vunpack.c.l.b16 %v293
        %v822 = vunpack.c.l.b16 %v294
        %v823 = vunpack.c.l.b16 %v295
        %v824 = vunpack.c.l.b16 %v296
        %v825 = vunpack.c.l.b16 %v297
        %v826 = vunpack.c.l.b16 %v298
        %v827 = vunpack.c.l.b16 %v299
        %v828 = vunpack.c.l.b16 %v300
        %v829 = vunpack.c.l.b16 %v301
        %v830 = vunpack.c.l.b16 %v302
        %v831 = vunpack.c.l.b16 %v303
        %v832 = vunpack.c.l.b16 %v304
        %v833 = vunpack.c.l.b16 %v305
        %v834 = vunpack.c.l.b16 %v306
        %v835 = vunpack.c.l.b16 %v307
        %v836 = vunpack.c.l.b16 %v308
        %v837 = vunpack.c.l.b16 %v309
        %v838 = vunpack.c.l.b16 %v310
        %v839 = vunpack.c.l.b16 %v311
        %v840 = vunpack.c.l.b16 %v312
        %v841 = vunpack.c.l.b16 %v313
        %v842 = vunpack.c.l.b16 %v314
        %v843 = vunpack.c.l.b16 %v315
        %v844 = vunpack.c.l.b16 %v316
        %v845 = vunpack.c.l.b16 %v317
        %v846 = vunpack.c.l.b16 %v318
        %v847 = vunpack.c.l.b16 %v319
        %v848 = vunpack.c.l.b16 %v320
        %v849 = vunpack.c.l.b16 %v321
        %v850 = vunpack.c.l.b16 %v322
        %v851 = vunpack.c.l.b16 %v323
        %v852 = vunpack.c.l.b16 %v324
        %v853 = vunpack.c.l.b16 %v325
        %v854 = vunpack.c.l.b16 %v326
        %v855 = vunpack.c.l.b16 %v327
        %v856 = vunpack.c.l.b16 %v328
        %v857 = vunpack.c.l.b16 %v329
        %v858 = vunpack.c.l.b16 %v330
        %v859 = vunpack.c.l.b16 %v331
        %v860 = vunpack.c.l.b16 %v332
        %v861 = vunpack.c.l.b16 %v333
        %v862 = vunpack.c.l.b16 %v334
        %v863 = vunpack.c.l.b16 %v335
        %v864 = vunpack.c.l.b16 %v336
        %v865 = vunpack.c.l.b16 %v337
        %v866 = vunpack.c.l.b16 %v338
        %v867 = vunpack.c.l.b16 %v339
        %v868 = vunpack.c.l.b16 %v340
        %v869 = vunpack.c.l.b16 %v341
        %v870 = vunpack.c.l.b16 %v342
        %v871 = vunpack.c.l.b16 %v343
        %v872 = vunpack.c.l.b16 %v344
        %v873 = vunpack.c.l.b16 %v345
        %v874 = vunpack.c.l.b16 %v346
        %v875 = vunpack.c.l.b16 %v347
        %v876 = vunpack.c.l.b16 %v348
        %v877 = vunpack.c.l.b16 %v349
        %v878 = vunpack.c.l.b16 %v350
        %v879 = vunpack.c.l.b16 %v351
        %v880 = vunpack.c.l.b16 %v352
        %v881 = vunpack.c.l.b16 %v353
        %v882 = vunpack.c.l.b16 %v354
        %v883 = vunpack.c.l.b16 %v355
        %v884 = vunpack.c.l.b16 %v356
        %v885 = vunpack.c.l.b16 %v357
        %v886 = vunpack.c.l.b16 %v358
        %v887 = vunpack.c.l.b16 %v359
        %v888 = vunpack.c.l.b16 %v360
        %v889 = vunpack.c.l.b16 %v361
        %v890 = vunpack.c.l.b16 %v362
        %v891 = vunpack.c.l.b16 %v363
        %v892 = vunpack.c.l.b16 %v364
        %v893 = vunpack.c.l.b16 %v365
        %v894 = vunpack.c.l.b16 %v366
        %v895 = vunpack.c.l.b16 %v367
        %v896 = vunpack.c.l.b16 %v368
        %v897 = vunpack.c.l.b16 %v369
        %v898 = vunpack.c.l.b16 %v370
        %v899 = vunpack.c.l.b16 %v371
        %v900 = vunpack.c.l.b16 %v372
        %v901 = vunpack.c.l.b16 %v373
        %v902 = vunpack.c.l.b16 %v374
        %v903 = vunpack.c.l.b16 %v375
        %v904 = vunpack.c.l.b16 %v376
        %v905 = vunpack.c.l.b16 %v377
        %v906 = vunpack.c.l.b16 %v378
        %v907 = vunpack.c.l.b16 %v379
        %v908 = vunpack.c.l.b16 %v380
        %v909 = vunpack.c.l.b16 %v381
        %v910 = vunpack.c.l.b16 %v382
        %v911 = vunpack.c.l.b16 %v383
        %v912 = vunpack.c.l.b16 %v384
        %v913 = vunpack.c.l.b16 %v385
        %v914 = vunpack.c.l.b16 %v386
        %v915 = vunpack.c.l.b16 %v387
        %v916 = vunpack.c.l.b16 %v388
        %v917 = vunpack.c.l.b16 %v389
        %v918 = vunpack.c.l.b16 %v390
        %v919 = vunpack.c.l.b16 %v391
        %v920 = vunpack.c.l.b16 %v392
        %v921 = vunpack.c.l.b16 %v393
        %v922 = vunpack.c.l.b16 %v394
        %v923 = vunpack.c.l.b16 %v395
        %v924 = vunpack.c.l.b16 %v396
        %v925 = vunpack.c.l.b16 %v397
        %v926 = vunpack.c.l.b16 %v398
        %v927 = vunpack.c.l.b16 %v399
        %v928 = vunpack.c.l.b16 %v400
        %v929 = vpack.c.b16 %v674, %v673
        %v930 = vpack.c.b16 %v676, %v675
        %v931 = vpack.c.b16 %v678, %v677
        %v932 = vpack.c.b16 %v680, %v679
        %v933 = vpack.c.b16 %v682, %v681
        %v934 = vpack.c.b16 %v684, %v683
        %v935 = vpack.c.b16 %v686, %v685
        %v936 = vpack.c.b16 %v688, %v687
        %v937 = vpack.c.b16 %v690, %v689
        %v938 = vpack.c.b16 %v692, %v691
        %v939 = vpack.c.b16 %v694, %v693
        %v940 = vpack.c.b16 %v696, %v695
        %v941 = vpack.c.b16 %v698, %v697
        %v942 = vpack.c.b16 %v700, %v699
        %v943 = vpack.c.b16 %v702, %v701
        %v944 = vpack.c.b16 %v704, %v703
        %v945 = vpack.c.b16 %v706, %v705
        %v946 = vpack.c.b16 %v708, %v707
        %v947 = vpack.c.b16 %v710, %v709
        %v948 = vpack.c.b16 %v712, %v711
        %v949 = vpack.c.b16 %v714, %v713
        %v950 = vpack.c.b16 %v716, %v715
        %v951 = vpack.c.b16 %v718, %v717
        %v952 = vpack.c.b16 %v720, %v719
        %v953 = vpack.c.b16 %v722, %v721
        %v954 = vpack.c.b16 %v724, %v723
        %v955 = vpack.c.b16 %v726, %v725
        %v956 = vpack.c.b16 %v728, %v727
        %v957 = vpack.c.b16 %v730, %v729
        %v958 = vpack.c.b16 %v732, %v731
        %v959 = vpack.c.b16 %v734, %v733
        %v960 = vpack.c.b16 %v736, %v735
        %v961 = vpack.c.b16 %v738, %v737
        %v962 = vpack.c.b16 %v740, %v739
        %v963 = vpack.c.b16 %v742, %v741
        %v964 = vpack.c.b16 %v744, %v743
        %v965 = vpack.c.b16 %v746, %v745
        %v966 = vpack.c.b16 %v748, %v747
        %v967 = vpack.c.b16 %v750, %v749
        %v968 = vpack.c.b16 %v752, %v751
        %v969 = vpack.c.b16 %v754, %v753
        %v970 = vpack.c.b16 %v756, %v755
        %v971 = vpack.c.b16 %v758, %v757
        %v972 = vpack.c.b16 %v760, %v759
        %v973 = vpack.c.b16 %v762, %v761
        %v974 = vpack.c.b16 %v764, %v763
        %v975 = vpack.c.b16 %v766, %v765
        %v976 = vpack.c.b16 %v768, %v767
        %v977 = vpack.c.b16 %v770, %v769
        %v978 = vpack.c.b16 %v772, %v771
        %v979 = vpack.c.b16 %v774, %v773
        %v980 = vpack.c.b16 %v776, %v775
        %v981 = vpack.c.b16 %v778, %v777
        %v982 = vpack.c.b16 %v780, %v779
        %v983 = vpack.c.b16 %v782, %v781
        %v984 = vpack.c.b16 %v784, %v783
        %v985 = vpack.c.b16 %v786, %v785
        %v986 = vpack.c.b16 %v788, %v787
        %v987 = vpack.c.b16 %v790, %v789
        %v988 = vpack.c.b16 %v792, %v791
        %v989 = vpack.c.b16 %v794, %v793
        %v990 = vpack.c.b16 %v796, %v795
        %v991 = vpack.c.b16 %v798, %v797
        %v992 = vpack.c.b16 %v800, %v799
        %v993 = vpack.c.b16 %v802, %v801
        %v994 = vpack.c.b16 %v804, %v803
        %v995 = vpack.c.b16 %v806, %v805
        %v996 = vpack.c.b16 %v808, %v807
        %v997 = vpack.c.b16 %v810, %v809
        %v998 = vpack.c.b16 %v812, %v811
        %v999 = vpack.c.b16 %v814, %v813
        %v1000 = vpack.c.b16 %v816, %v815
        %v1001 = vpack.c.b16 %v818, %v817
        %v1002 = vpack.c.b16 %v820, %v819
        %v1003 = vpack.c.b16 %v822, %v821
        %v1004 = vpack.c.b16 %v824, %v823
        %v1005 = vpack.c.b16 %v826, %v825
        %v1006 = vpack.c.b16 %v828, %v827
        %v1007 = vpack.c.b16 %v830, %v829
        %v1008 = vpack.c.b16 %v832, %v831
        %v1009 = vpack.c.b16 %v834, %v833
        %v1010 = vpack.c.b16 %v836, %v835
        %v1011 = vpack.c.b16 %v838, %v837
        %v1012 = vpack.c.b16 %v840, %v839
        %v1013 = vpack.c.b16 %v842, %v841
        %v1014 = vpack.c.b16 %v844, %v843
        %v1015 = vpack.c.b16 %v846, %v845
        %v1016 = vpack.c.b16 %v848, %v847
        %v1017 = vpack.c.b16 %v850, %v849
        %v1018 = vpack.c.b16 %v852, %v851
        %v1019 = vpack.c.b16 %v854, %v853
        %v1020 = vpack.c.b16 %v856, %v855
        %v1021 = vpack.c.b16 %v858, %v857
        %v1022 = vpack.c.b16 %v860, %v859
        %v1023 = vpack.c.b16 %v862, %v861
        %v1024 = vpack.c.b16 %v864, %v863
        %v1025 = vpack.c.b16 %v866, %v865
        %v1026 = vpack.c.b16 %v868, %v867
        %v1027 = vpack.c.b16 %v870, %v869
        %v1028 = vpack.c.b16 %v872, %v871
        %v1029 = vpack.c.b16 %v874, %v873
        %v1030 = vpack.c.b16 %v876, %v875
        %v1031 = vpack.c.b16 %v878, %v877
        %v1032 = vpack.c.b16 %v880, %v879
        %v1033 = vpack.c.b16 %v882, %v881
        %v1034 = vpack.c.b16 %v884, %v883
        %v1035 = vpack.c.b16 %v886, %v885
        %v1036 = vpack.c.b16 %v888, %v887
        %v1037 = vpack.c.b16 %v890, %v889
        %v1038 = vpack.c.b16 %v892, %v891
        %v1039 = vpack.c.b16 %v894, %v893
        %v1040 = vpack.c.b16 %v896, %v895
        %v1041 = vpack.c.b16 %v898, %v897
        %v1042 = vpack.c.b16 %v900, %v899
        %v1043 = vpack.c.b16 %v902, %v901
        %v1044 = vpack.c.b16 %v904, %v903
        %v1045 = vpack.c.b16 %v906, %v905
        %v1046 = vpack.c.b16 %v908, %v907
        %v1047 = vpack.c.b16 %v910, %v909
        %v1048 = vpack.c.b16 %v912, %v911
        %v1049 = vpack.c.b16 %v914, %v913
        %v1050 = vpack.c.b16 %v916, %v915
        %v1051 = vpack.c.b16 %v918, %v917
        %v1052 = vpack.c.b16 %v920, %v919
        %v1053 = vpack.c.b16 %v922, %v921
        %v1054 = vpack.c.b16 %v924, %v923
        %v1055 = vpack.c.b16 %v926, %v925
        %v1056 = vpack.c.b16 %v928, %v927
        %v1201 = vunpack.c.l.b16 %v401
        %v1202 = vunpack.c.l.b16 %v402
        %v1203 = vunpack.c.l.b16 %v403
        %v1204 = vunpack.c.l.b16 %v404
        %v1205 = vunpack.c.l.b16 %v405
        %v1206 = vunpack.c.l.b16 %v406
        %v1207 = vunpack.c.l.b16 %v407
        %v1208 = vunpack.c.l.b16 %v408
        %v1209 = vunpack.c.l.b16 %v409
        %v1210 = vunpack.c.l.b16 %v410
        %v1211 = vunpack.c.l.b16 %v411
        %v1212 = vunpack.c.l.b16 %v412
        %v1213 = vunpack.c.l.b16 %v413
        %v1214 = vunpack.c.l.b16 %v414
        %v1215 = vunpack.c.l.b16 %v415
        %v1216 = vunpack.c.l.b16 %v416
        %v1217 = vpack.c.b16 %v1202, %v1201
        %v1218 = vpack.c.b16 %v1204, %v1203
        %v1219 = vpack.c.b16 %v1206, %v1205
        %v1220 = vpack.c.b16 %v1208, %v1207
        %v1221 = vpack.c.b16 %v1210, %v1209
        %v1222 = vpack.c.b16 %v1212, %v1211
        %v1223 = vpack.c.b16 %v1214, %v1213
        %v1224 = vpack.c.b16 %v1216, %v1215
        %1233 = vmatpush.bf16.msra.mxu0 %v1224
        %1234 = vmatpush.bf16.msra.mxu0 %v1223
        %1235 = vmatpush.bf16.msra.mxu0 %v1222
        %1236 = vmatpush.bf16.msra.mxu0 %v1221
        %1237 = vmatpush.bf16.msra.mxu0 %v1220
        %1238 = vmatpush.bf16.msra.mxu0 %v1219
        %1239 = vmatpush.bf16.msra.mxu0 %v1218
        %1240 = vmatpush.bf16.msra.mxu0 %v1217
        %1241 = vmatmul.bf16.gmra.mxu0 %v929
        %v1242 = vpop.f32.mrf.mxu0
        %v1243 = vadd.f32 0.0, %v1242
        %v1244 = vpop.f32.mrf.mxu0
        %v1245 = vadd.f32 0.0, %v1244
        %1246 = vmatmul.bf16.gmra.mxu0 %v930
        %v1247 = vpop.f32.mrf.mxu0
        %v1248 = vadd.f32 0.0, %v1247
        %v1249 = vpop.f32.mrf.mxu0
        %v1250 = vadd.f32 0.0, %v1249
        %1251 = vmatmul.bf16.gmra.mxu0 %v931
        %v1252 = vpop.f32.mrf.mxu0
        %v1253 = vadd.f32 0.0, %v1252
        %v1254 = vpop.f32.mrf.mxu0
        %v1255 = vadd.f32 0.0, %v1254
        %1256 = vmatmul.bf16.gmra.mxu0 %v932
        %v1257 = vpop.f32.mrf.mxu0
        %v1258 = vadd.f32 0.0, %v1257
        %v1259 = vpop.f32.mrf.mxu0
        %v1260 = vadd.f32 0.0, %v1259
        %1261 = vmatmul.bf16.gmra.mxu0 %v933
        %v1262 = vpop.f32.mrf.mxu0
        %v1263 = vadd.f32 0.0, %v1262
        %v1264 = vpop.f32.mrf.mxu0
        %v1265 = vadd.f32 0.0, %v1264
        %1266 = vmatmul.bf16.gmra.mxu0 %v934
        %v1267 = vpop.f32.mrf.mxu0
        %v1268 = vadd.f32 0.0, %v1267
        %v1269 = vpop.f32.mrf.mxu0
        %v1270 = vadd.f32 0.0, %v1269
        %1271 = vmatmul.bf16.gmra.mxu0 %v935
        %v1272 = vpop.f32.mrf.mxu0
        %v1273 = vadd.f32 0.0, %v1272
        %v1274 = vpop.f32.mrf.mxu0
        %v1275 = vadd.f32 0.0, %v1274
        %1276 = vmatmul.bf16.gmra.mxu0 %v936
        %v1277 = vpop.f32.mrf.mxu0
        %v1278 = vadd.f32 0.0, %v1277
        %v1279 = vpop.f32.mrf.mxu0
        %v1280 = vadd.f32 0.0, %v1279
        %1281 = vmatmul.bf16.gmra.mxu0 %v937
        %v1282 = vpop.f32.mrf.mxu0
        %v1283 = vadd.f32 0.0, %v1282
        %v1284 = vpop.f32.mrf.mxu0
        %v1285 = vadd.f32 0.0, %v1284
        %1286 = vmatmul.bf16.gmra.mxu0 %v938
        %v1287 = vpop.f32.mrf.mxu0
        %v1288 = vadd.f32 0.0, %v1287
        %v1289 = vpop.f32.mrf.mxu0
        %v1290 = vadd.f32 0.0, %v1289
        %1291 = vmatmul.bf16.gmra.mxu0 %v939
        %v1292 = vpop.f32.mrf.mxu0
        %v1293 = vadd.f32 0.0, %v1292
        %v1294 = vpop.f32.mrf.mxu0
        %v1295 = vadd.f32 0.0, %v1294
        %1296 = vmatmul.bf16.gmra.mxu0 %v940
        %v1297 = vpop.f32.mrf.mxu0
        %v1298 = vadd.f32 0.0, %v1297
        %v1299 = vpop.f32.mrf.mxu0
        %v1300 = vadd.f32 0.0, %v1299
        %1301 = vmatmul.bf16.gmra.mxu0 %v941
        %v1302 = vpop.f32.mrf.mxu0
        %v1303 = vadd.f32 0.0, %v1302
        %v1304 = vpop.f32.mrf.mxu0
        %v1305 = vadd.f32 0.0, %v1304
        %1306 = vmatmul.bf16.gmra.mxu0 %v942
        %v1307 = vpop.f32.mrf.mxu0
        %v1308 = vadd.f32 0.0, %v1307
        %v1309 = vpop.f32.mrf.mxu0
        %v1310 = vadd.f32 0.0, %v1309
        %1311 = vmatmul.bf16.gmra.mxu0 %v943
        %v1312 = vpop.f32.mrf.mxu0
        %v1313 = vadd.f32 0.0, %v1312
        %v1314 = vpop.f32.mrf.mxu0
        %v1315 = vadd.f32 0.0, %v1314
        %1316 = vmatmul.bf16.gmra.mxu0 %v944
        %v1317 = vpop.f32.mrf.mxu0
        %v1318 = vadd.f32 0.0, %v1317
        %v1319 = vpop.f32.mrf.mxu0
        %v1320 = vadd.f32 0.0, %v1319
        %1321 = vmatmul.bf16.gmra.mxu0 %v945
        %v1322 = vpop.f32.mrf.mxu0
        %v1323 = vadd.f32 0.0, %v1322
        %v1324 = vpop.f32.mrf.mxu0
        %v1325 = vadd.f32 0.0, %v1324
        %1326 = vmatmul.bf16.gmra.mxu0 %v946
        %v1327 = vpop.f32.mrf.mxu0
        %v1328 = vadd.f32 0.0, %v1327
        %v1329 = vpop.f32.mrf.mxu0
        %v1330 = vadd.f32 0.0, %v1329
        %1331 = vmatmul.bf16.gmra.mxu0 %v947
        %v1332 = vpop.f32.mrf.mxu0
        %v1333 = vadd.f32 0.0, %v1332
        %v1334 = vpop.f32.mrf.mxu0
        %v1335 = vadd.f32 0.0, %v1334
        %1336 = vmatmul.bf16.gmra.mxu0 %v948
        %v1337 = vpop.f32.mrf.mxu0
        %v1338 = vadd.f32 0.0, %v1337
        %v1339 = vpop.f32.mrf.mxu0
        %v1340 = vadd.f32 0.0, %v1339
        %1341 = vmatmul.bf16.gmra.mxu0 %v949
        %v1342 = vpop.f32.mrf.mxu0
        %v1343 = vadd.f32 0.0, %v1342
        %v1344 = vpop.f32.mrf.mxu0
        %v1345 = vadd.f32 0.0, %v1344
        %1346 = vmatmul.bf16.gmra.mxu0 %v950
        %v1347 = vpop.f32.mrf.mxu0
        %v1348 = vadd.f32 0.0, %v1347
        %v1349 = vpop.f32.mrf.mxu0
        %v1350 = vadd.f32 0.0, %v1349
        %1351 = vmatmul.bf16.gmra.mxu0 %v951
        %v1352 = vpop.f32.mrf.mxu0
        %v1353 = vadd.f32 0.0, %v1352
        %v1354 = vpop.f32.mrf.mxu0
        %v1355 = vadd.f32 0.0, %v1354
        %1356 = vmatmul.bf16.gmra.mxu0 %v952
        %v1357 = vpop.f32.mrf.mxu0
        %v1358 = vadd.f32 0.0, %v1357
        %v1359 = vpop.f32.mrf.mxu0
        %v1360 = vadd.f32 0.0, %v1359
        %1361 = vmatmul.bf16.gmra.mxu0 %v953
        %v1362 = vpop.f32.mrf.mxu0
        %v1363 = vadd.f32 0.0, %v1362
        %v1364 = vpop.f32.mrf.mxu0
        %v1365 = vadd.f32 0.0, %v1364
        %1366 = vmatmul.bf16.gmra.mxu0 %v954
        %v1367 = vpop.f32.mrf.mxu0
        %v1368 = vadd.f32 0.0, %v1367
        %v1369 = vpop.f32.mrf.mxu0
        %v1370 = vadd.f32 0.0, %v1369
        %1371 = vmatmul.bf16.gmra.mxu0 %v955
        %v1372 = vpop.f32.mrf.mxu0
        %v1373 = vadd.f32 0.0, %v1372
        %v1374 = vpop.f32.mrf.mxu0
        %v1375 = vadd.f32 0.0, %v1374
        %1376 = vmatmul.bf16.gmra.mxu0 %v956
        %v1377 = vpop.f32.mrf.mxu0
        %v1378 = vadd.f32 0.0, %v1377
        %v1379 = vpop.f32.mrf.mxu0
        %v1380 = vadd.f32 0.0, %v1379
        %1381 = vmatmul.bf16.gmra.mxu0 %v957
        %v1382 = vpop.f32.mrf.mxu0
        %v1383 = vadd.f32 0.0, %v1382
        %v1384 = vpop.f32.mrf.mxu0
        %v1385 = vadd.f32 0.0, %v1384
        %1386 = vmatmul.bf16.gmra.mxu0 %v958
        %v1387 = vpop.f32.mrf.mxu0
        %v1388 = vadd.f32 0.0, %v1387
        %v1389 = vpop.f32.mrf.mxu0
        %v1390 = vadd.f32 0.0, %v1389
        %1391 = vmatmul.bf16.gmra.mxu0 %v959
        %v1392 = vpop.f32.mrf.mxu0
        %v1393 = vadd.f32 0.0, %v1392
        %v1394 = vpop.f32.mrf.mxu0
        %v1395 = vadd.f32 0.0, %v1394
        %1396 = vmatmul.bf16.gmra.mxu0 %v960
        %v1397 = vpop.f32.mrf.mxu0
        %v1398 = vadd.f32 0.0, %v1397
        %v1399 = vpop.f32.mrf.mxu0
        %v1400 = vadd.f32 0.0, %v1399
        %1401 = vmatmul.bf16.gmra.mxu0 %v961
        %v1402 = vpop.f32.mrf.mxu0
        %v1403 = vadd.f32 0.0, %v1402
        %v1404 = vpop.f32.mrf.mxu0
        %v1405 = vadd.f32 0.0, %v1404
        %1406 = vmatmul.bf16.gmra.mxu0 %v962
        %v1407 = vpop.f32.mrf.mxu0
        %v1408 = vadd.f32 0.0, %v1407
        %v1409 = vpop.f32.mrf.mxu0
        %v1410 = vadd.f32 0.0, %v1409
        %1411 = vmatmul.bf16.gmra.mxu0 %v963
        %v1412 = vpop.f32.mrf.mxu0
        %v1413 = vadd.f32 0.0, %v1412
        %v1414 = vpop.f32.mrf.mxu0
        %v1415 = vadd.f32 0.0, %v1414
        %1416 = vmatmul.bf16.gmra.mxu0 %v964
        %v1417 = vpop.f32.mrf.mxu0
        %v1418 = vadd.f32 0.0, %v1417
        %v1419 = vpop.f32.mrf.mxu0
        %v1420 = vadd.f32 0.0, %v1419
        %1421 = vmatmul.bf16.gmra.mxu0 %v965
        %v1422 = vpop.f32.mrf.mxu0
        %v1423 = vadd.f32 0.0, %v1422
        %v1424 = vpop.f32.mrf.mxu0
        %v1425 = vadd.f32 0.0, %v1424
        %1426 = vmatmul.bf16.gmra.mxu0 %v966
        %v1427 = vpop.f32.mrf.mxu0
        %v1428 = vadd.f32 0.0, %v1427
        %v1429 = vpop.f32.mrf.mxu0
        %v1430 = vadd.f32 0.0, %v1429
        %1431 = vmatmul.bf16.gmra.mxu0 %v967
        %v1432 = vpop.f32.mrf.mxu0
        %v1433 = vadd.f32 0.0, %v1432
        %v1434 = vpop.f32.mrf.mxu0
        %v1435 = vadd.f32 0.0, %v1434
        %1436 = vmatmul.bf16.gmra.mxu0 %v968
        %v1437 = vpop.f32.mrf.mxu0
        %v1438 = vadd.f32 0.0, %v1437
        %v1439 = vpop.f32.mrf.mxu0
        %v1440 = vadd.f32 0.0, %v1439
        %1441 = vmatmul.bf16.gmra.mxu0 %v969
        %v1442 = vpop.f32.mrf.mxu0
        %v1443 = vadd.f32 0.0, %v1442
        %v1444 = vpop.f32.mrf.mxu0
        %v1445 = vadd.f32 0.0, %v1444
        %1446 = vmatmul.bf16.gmra.mxu0 %v970
        %v1447 = vpop.f32.mrf.mxu0
        %v1448 = vadd.f32 0.0, %v1447
        %v1449 = vpop.f32.mrf.mxu0
        %v1450 = vadd.f32 0.0, %v1449
        %1451 = vmatmul.bf16.gmra.mxu0 %v971
        %v1452 = vpop.f32.mrf.mxu0
        %v1453 = vadd.f32 0.0, %v1452
        %v1454 = vpop.f32.mrf.mxu0
        %v1455 = vadd.f32 0.0, %v1454
        %1456 = vmatmul.bf16.gmra.mxu0 %v972
        %v1457 = vpop.f32.mrf.mxu0
        %v1458 = vadd.f32 0.0, %v1457
        %v1459 = vpop.f32.mrf.mxu0
        %v1460 = vadd.f32 0.0, %v1459
        %1461 = vmatmul.bf16.gmra.mxu0 %v973
        %v1462 = vpop.f32.mrf.mxu0
        %v1463 = vadd.f32 0.0, %v1462
        %v1464 = vpop.f32.mrf.mxu0
        %v1465 = vadd.f32 0.0, %v1464
        %1466 = vmatmul.bf16.gmra.mxu0 %v974
        %v1467 = vpop.f32.mrf.mxu0
        %v1468 = vadd.f32 0.0, %v1467
        %v1469 = vpop.f32.mrf.mxu0
        %v1470 = vadd.f32 0.0, %v1469
        %1471 = vmatmul.bf16.gmra.mxu0 %v975
        %v1472 = vpop.f32.mrf.mxu0
        %v1473 = vadd.f32 0.0, %v1472
        %v1474 = vpop.f32.mrf.mxu0
        %v1475 = vadd.f32 0.0, %v1474
        %1476 = vmatmul.bf16.gmra.mxu0 %v976
        %v1477 = vpop.f32.mrf.mxu0
        %v1478 = vadd.f32 0.0, %v1477
        %v1479 = vpop.f32.mrf.mxu0
        %v1480 = vadd.f32 0.0, %v1479
        %1481 = vmatmul.bf16.gmra.mxu0 %v977
        %v1482 = vpop.f32.mrf.mxu0
        %v1483 = vadd.f32 0.0, %v1482
        %v1484 = vpop.f32.mrf.mxu0
        %v1485 = vadd.f32 0.0, %v1484
        %1486 = vmatmul.bf16.gmra.mxu0 %v978
        %v1487 = vpop.f32.mrf.mxu0
        %v1488 = vadd.f32 0.0, %v1487
        %v1489 = vpop.f32.mrf.mxu0
        %v1490 = vadd.f32 0.0, %v1489
        %1491 = vmatmul.bf16.gmra.mxu0 %v979
        %v1492 = vpop.f32.mrf.mxu0
        %v1493 = vadd.f32 0.0, %v1492
        %v1494 = vpop.f32.mrf.mxu0
        %v1495 = vadd.f32 0.0, %v1494
        %1496 = vmatmul.bf16.gmra.mxu0 %v980
        %v1497 = vpop.f32.mrf.mxu0
        %v1498 = vadd.f32 0.0, %v1497
        %v1499 = vpop.f32.mrf.mxu0
        %v1500 = vadd.f32 0.0, %v1499
        %1501 = vmatmul.bf16.gmra.mxu0 %v981
        %v1502 = vpop.f32.mrf.mxu0
        %v1503 = vadd.f32 0.0, %v1502
        %v1504 = vpop.f32.mrf.mxu0
        %v1505 = vadd.f32 0.0, %v1504
        %1506 = vmatmul.bf16.gmra.mxu0 %v982
        %v1507 = vpop.f32.mrf.mxu0
        %v1508 = vadd.f32 0.0, %v1507
        %v1509 = vpop.f32.mrf.mxu0
        %v1510 = vadd.f32 0.0, %v1509
        %1511 = vmatmul.bf16.gmra.mxu0 %v983
        %v1512 = vpop.f32.mrf.mxu0
        %v1513 = vadd.f32 0.0, %v1512
        %v1514 = vpop.f32.mrf.mxu0
        %v1515 = vadd.f32 0.0, %v1514
        %1516 = vmatmul.bf16.gmra.mxu0 %v984
        %v1517 = vpop.f32.mrf.mxu0
        %v1518 = vadd.f32 0.0, %v1517
        %v1519 = vpop.f32.mrf.mxu0
        %v1520 = vadd.f32 0.0, %v1519
        %1521 = vmatmul.bf16.gmra.mxu0 %v985
        %v1522 = vpop.f32.mrf.mxu0
        %v1523 = vadd.f32 0.0, %v1522
        %v1524 = vpop.f32.mrf.mxu0
        %v1525 = vadd.f32 0.0, %v1524
        %1526 = vmatmul.bf16.gmra.mxu0 %v986
        %v1527 = vpop.f32.mrf.mxu0
        %v1528 = vadd.f32 0.0, %v1527
        %v1529 = vpop.f32.mrf.mxu0
        %v1530 = vadd.f32 0.0, %v1529
        %1531 = vmatmul.bf16.gmra.mxu0 %v987
        %v1532 = vpop.f32.mrf.mxu0
        %v1533 = vadd.f32 0.0, %v1532
        %v1534 = vpop.f32.mrf.mxu0
        %v1535 = vadd.f32 0.0, %v1534
        %1536 = vmatmul.bf16.gmra.mxu0 %v988
        %v1537 = vpop.f32.mrf.mxu0
        %v1538 = vadd.f32 0.0, %v1537
        %v1539 = vpop.f32.mrf.mxu0
        %v1540 = vadd.f32 0.0, %v1539
        %1541 = vmatmul.bf16.gmra.mxu0 %v989
        %v1542 = vpop.f32.mrf.mxu0
        %v1543 = vadd.f32 0.0, %v1542
        %v1544 = vpop.f32.mrf.mxu0
        %v1545 = vadd.f32 0.0, %v1544
        %1546 = vmatmul.bf16.gmra.mxu0 %v990
        %v1547 = vpop.f32.mrf.mxu0
        %v1548 = vadd.f32 0.0, %v1547
        %v1549 = vpop.f32.mrf.mxu0
        %v1550 = vadd.f32 0.0, %v1549
        %1551 = vmatmul.bf16.gmra.mxu0 %v991
        %v1552 = vpop.f32.mrf.mxu0
        %v1553 = vadd.f32 0.0, %v1552
        %v1554 = vpop.f32.mrf.mxu0
        %v1555 = vadd.f32 0.0, %v1554
        %1556 = vmatmul.bf16.gmra.mxu0 %v992
        %v1557 = vpop.f32.mrf.mxu0
        %v1558 = vadd.f32 0.0, %v1557
        %v1559 = vpop.f32.mrf.mxu0
        %v1560 = vadd.f32 0.0, %v1559
        %1561 = vmatmul.bf16.gmra.mxu0 %v993
        %v1562 = vpop.f32.mrf.mxu0
        %v1563 = vadd.f32 0.0, %v1562
        %v1564 = vpop.f32.mrf.mxu0
        %v1565 = vadd.f32 0.0, %v1564
        %1566 = vmatmul.bf16.gmra.mxu0 %v994
        %v1567 = vpop.f32.mrf.mxu0
        %v1568 = vadd.f32 0.0, %v1567
        %v1569 = vpop.f32.mrf.mxu0
        %v1570 = vadd.f32 0.0, %v1569
        %1571 = vmatmul.bf16.gmra.mxu0 %v995
        %v1572 = vpop.f32.mrf.mxu0
        %v1573 = vadd.f32 0.0, %v1572
        %v1574 = vpop.f32.mrf.mxu0
        %v1575 = vadd.f32 0.0, %v1574
        %1576 = vmatmul.bf16.gmra.mxu0 %v996
        %v1577 = vpop.f32.mrf.mxu0
        %v1578 = vadd.f32 0.0, %v1577
        %v1579 = vpop.f32.mrf.mxu0
        %v1580 = vadd.f32 0.0, %v1579
        %1581 = vmatmul.bf16.gmra.mxu0 %v997
        %v1582 = vpop.f32.mrf.mxu0
        %v1583 = vadd.f32 0.0, %v1582
        %v1584 = vpop.f32.mrf.mxu0
        %v1585 = vadd.f32 0.0, %v1584
        %1586 = vmatmul.bf16.gmra.mxu0 %v998
        %v1587 = vpop.f32.mrf.mxu0
        %v1588 = vadd.f32 0.0, %v1587
        %v1589 = vpop.f32.mrf.mxu0
        %v1590 = vadd.f32 0.0, %v1589
        %1591 = vmatmul.bf16.gmra.mxu0 %v999
        %v1592 = vpop.f32.mrf.mxu0
        %v1593 = vadd.f32 0.0, %v1592
        %v1594 = vpop.f32.mrf.mxu0
        %v1595 = vadd.f32 0.0, %v1594
        %1596 = vmatmul.bf16.gmra.mxu0 %v1000
        %v1597 = vpop.f32.mrf.mxu0
        %v1598 = vadd.f32 0.0, %v1597
        %v1599 = vpop.f32.mrf.mxu0
        %v1600 = vadd.f32 0.0, %v1599
        %1601 = vmatmul.bf16.gmra.mxu0 %v1001
        %v1602 = vpop.f32.mrf.mxu0
        %v1603 = vadd.f32 0.0, %v1602
        %v1604 = vpop.f32.mrf.mxu0
        %v1605 = vadd.f32 0.0, %v1604
        %1606 = vmatmul.bf16.gmra.mxu0 %v1002
        %v1607 = vpop.f32.mrf.mxu0
        %v1608 = vadd.f32 0.0, %v1607
        %v1609 = vpop.f32.mrf.mxu0
        %v1610 = vadd.f32 0.0, %v1609
        %1611 = vmatmul.bf16.gmra.mxu0 %v1003
        %v1612 = vpop.f32.mrf.mxu0
        %v1613 = vadd.f32 0.0, %v1612
        %v1614 = vpop.f32.mrf.mxu0
        %v1615 = vadd.f32 0.0, %v1614
        %1616 = vmatmul.bf16.gmra.mxu0 %v1004
        %v1617 = vpop.f32.mrf.mxu0
        %v1618 = vadd.f32 0.0, %v1617
        %v1619 = vpop.f32.mrf.mxu0
        %v1620 = vadd.f32 0.0, %v1619
        %1621 = vmatmul.bf16.gmra.mxu0 %v1005
        %v1622 = vpop.f32.mrf.mxu0
        %v1623 = vadd.f32 0.0, %v1622
        %v1624 = vpop.f32.mrf.mxu0
        %v1625 = vadd.f32 0.0, %v1624
        %1626 = vmatmul.bf16.gmra.mxu0 %v1006
        %v1627 = vpop.f32.mrf.mxu0
        %v1628 = vadd.f32 0.0, %v1627
        %v1629 = vpop.f32.mrf.mxu0
        %v1630 = vadd.f32 0.0, %v1629
        %1631 = vmatmul.bf16.gmra.mxu0 %v1007
        %v1632 = vpop.f32.mrf.mxu0
        %v1633 = vadd.f32 0.0, %v1632
        %v1634 = vpop.f32.mrf.mxu0
        %v1635 = vadd.f32 0.0, %v1634
        %1636 = vmatmul.bf16.gmra.mxu0 %v1008
        %v1637 = vpop.f32.mrf.mxu0
        %v1638 = vadd.f32 0.0, %v1637
        %v1639 = vpop.f32.mrf.mxu0
        %v1640 = vadd.f32 0.0, %v1639
        %1641 = vmatmul.bf16.gmra.mxu0 %v1009
        %v1642 = vpop.f32.mrf.mxu0
        %v1643 = vadd.f32 0.0, %v1642
        %v1644 = vpop.f32.mrf.mxu0
        %v1645 = vadd.f32 0.0, %v1644
        %1646 = vmatmul.bf16.gmra.mxu0 %v1010
        %v1647 = vpop.f32.mrf.mxu0
        %v1648 = vadd.f32 0.0, %v1647
        %v1649 = vpop.f32.mrf.mxu0
        %v1650 = vadd.f32 0.0, %v1649
        %1651 = vmatmul.bf16.gmra.mxu0 %v1011
        %v1652 = vpop.f32.mrf.mxu0
        %v1653 = vadd.f32 0.0, %v1652
        %v1654 = vpop.f32.mrf.mxu0
        %v1655 = vadd.f32 0.0, %v1654
        %1656 = vmatmul.bf16.gmra.mxu0 %v1012
        %v1657 = vpop.f32.mrf.mxu0
        %v1658 = vadd.f32 0.0, %v1657
        %v1659 = vpop.f32.mrf.mxu0
        %v1660 = vadd.f32 0.0, %v1659
        %1661 = vmatmul.bf16.gmra.mxu0 %v1013
        %v1662 = vpop.f32.mrf.mxu0
        %v1663 = vadd.f32 0.0, %v1662
        %v1664 = vpop.f32.mrf.mxu0
        %v1665 = vadd.f32 0.0, %v1664
        %1666 = vmatmul.bf16.gmra.mxu0 %v1014
        %v1667 = vpop.f32.mrf.mxu0
        %v1668 = vadd.f32 0.0, %v1667
        %v1669 = vpop.f32.mrf.mxu0
        %v1670 = vadd.f32 0.0, %v1669
        %1671 = vmatmul.bf16.gmra.mxu0 %v1015
        %v1672 = vpop.f32.mrf.mxu0
        %v1673 = vadd.f32 0.0, %v1672
        %v1674 = vpop.f32.mrf.mxu0
        %v1675 = vadd.f32 0.0, %v1674
        %1676 = vmatmul.bf16.gmra.mxu0 %v1016
        %v1677 = vpop.f32.mrf.mxu0
        %v1678 = vadd.f32 0.0, %v1677
        %v1679 = vpop.f32.mrf.mxu0
        %v1680 = vadd.f32 0.0, %v1679
        %1681 = vmatmul.bf16.gmra.mxu0 %v1017
        %v1682 = vpop.f32.mrf.mxu0
        %v1683 = vadd.f32 0.0, %v1682
        %v1684 = vpop.f32.mrf.mxu0
        %v1685 = vadd.f32 0.0, %v1684
        %1686 = vmatmul.bf16.gmra.mxu0 %v1018
        %v1687 = vpop.f32.mrf.mxu0
        %v1688 = vadd.f32 0.0, %v1687
        %v1689 = vpop.f32.mrf.mxu0
        %v1690 = vadd.f32 0.0, %v1689
        %1691 = vmatmul.bf16.gmra.mxu0 %v1019
        %v1692 = vpop.f32.mrf.mxu0
        %v1693 = vadd.f32 0.0, %v1692
        %v1694 = vpop.f32.mrf.mxu0
        %v1695 = vadd.f32 0.0, %v1694
        %1696 = vmatmul.bf16.gmra.mxu0 %v1020
        %v1697 = vpop.f32.mrf.mxu0
        %v1698 = vadd.f32 0.0, %v1697
        %v1699 = vpop.f32.mrf.mxu0
        %v1700 = vadd.f32 0.0, %v1699
        %1701 = vmatmul.bf16.gmra.mxu0 %v1021
        %v1702 = vpop.f32.mrf.mxu0
        %v1703 = vadd.f32 0.0, %v1702
        %v1704 = vpop.f32.mrf.mxu0
        %v1705 = vadd.f32 0.0, %v1704
        %1706 = vmatmul.bf16.gmra.mxu0 %v1022
        %v1707 = vpop.f32.mrf.mxu0
        %v1708 = vadd.f32 0.0, %v1707
        %v1709 = vpop.f32.mrf.mxu0
        %v1710 = vadd.f32 0.0, %v1709
        %1711 = vmatmul.bf16.gmra.mxu0 %v1023
        %v1712 = vpop.f32.mrf.mxu0
        %v1713 = vadd.f32 0.0, %v1712
        %v1714 = vpop.f32.mrf.mxu0
        %v1715 = vadd.f32 0.0, %v1714
        %1716 = vmatmul.bf16.gmra.mxu0 %v1024
        %v1717 = vpop.f32.mrf.mxu0
        %v1718 = vadd.f32 0.0, %v1717
        %v1719 = vpop.f32.mrf.mxu0
        %v1720 = vadd.f32 0.0, %v1719
        %1721 = vmatmul.bf16.gmra.mxu0 %v1025
        %v1722 = vpop.f32.mrf.mxu0
        %v1723 = vadd.f32 0.0, %v1722
        %v1724 = vpop.f32.mrf.mxu0
        %v1725 = vadd.f32 0.0, %v1724
        %1726 = vmatmul.bf16.gmra.mxu0 %v1026
        %v1727 = vpop.f32.mrf.mxu0
        %v1728 = vadd.f32 0.0, %v1727
        %v1729 = vpop.f32.mrf.mxu0
        %v1730 = vadd.f32 0.0, %v1729
        %1731 = vmatmul.bf16.gmra.mxu0 %v1027
        %v1732 = vpop.f32.mrf.mxu0
        %v1733 = vadd.f32 0.0, %v1732
        %v1734 = vpop.f32.mrf.mxu0
        %v1735 = vadd.f32 0.0, %v1734
        %1736 = vmatmul.bf16.gmra.mxu0 %v1028
        %v1737 = vpop.f32.mrf.mxu0
        %v1738 = vadd.f32 0.0, %v1737
        %v1739 = vpop.f32.mrf.mxu0
        %v1740 = vadd.f32 0.0, %v1739
        %1741 = vmatmul.bf16.gmra.mxu0 %v1029
        %v1742 = vpop.f32.mrf.mxu0
        %v1743 = vadd.f32 0.0, %v1742
        %v1744 = vpop.f32.mrf.mxu0
        %v1745 = vadd.f32 0.0, %v1744
        %1746 = vmatmul.bf16.gmra.mxu0 %v1030
        %v1747 = vpop.f32.mrf.mxu0
        %v1748 = vadd.f32 0.0, %v1747
        %v1749 = vpop.f32.mrf.mxu0
        %v1750 = vadd.f32 0.0, %v1749
        %1751 = vmatmul.bf16.gmra.mxu0 %v1031
        %v1752 = vpop.f32.mrf.mxu0
        %v1753 = vadd.f32 0.0, %v1752
        %v1754 = vpop.f32.mrf.mxu0
        %v1755 = vadd.f32 0.0, %v1754
        %1756 = vmatmul.bf16.gmra.mxu0 %v1032
        %v1757 = vpop.f32.mrf.mxu0
        %v1758 = vadd.f32 0.0, %v1757
        %v1759 = vpop.f32.mrf.mxu0
        %v1760 = vadd.f32 0.0, %v1759
        %1761 = vmatmul.bf16.gmra.mxu0 %v1033
        %v1762 = vpop.f32.mrf.mxu0
        %v1763 = vadd.f32 0.0, %v1762
        %v1764 = vpop.f32.mrf.mxu0
        %v1765 = vadd.f32 0.0, %v1764
        %1766 = vmatmul.bf16.gmra.mxu0 %v1034
        %v1767 = vpop.f32.mrf.mxu0
        %v1768 = vadd.f32 0.0, %v1767
        %v1769 = vpop.f32.mrf.mxu0
        %v1770 = vadd.f32 0.0, %v1769
        %1771 = vmatmul.bf16.gmra.mxu0 %v1035
        %v1772 = vpop.f32.mrf.mxu0
        %v1773 = vadd.f32 0.0, %v1772
        %v1774 = vpop.f32.mrf.mxu0
        %v1775 = vadd.f32 0.0, %v1774
        %1776 = vmatmul.bf16.gmra.mxu0 %v1036
        %v1777 = vpop.f32.mrf.mxu0
        %v1778 = vadd.f32 0.0, %v1777
        %v1779 = vpop.f32.mrf.mxu0
        %v1780 = vadd.f32 0.0, %v1779
        %1781 = vmatmul.bf16.gmra.mxu0 %v1037
        %v1782 = vpop.f32.mrf.mxu0
        %v1783 = vadd.f32 0.0, %v1782
        %v1784 = vpop.f32.mrf.mxu0
        %v1785 = vadd.f32 0.0, %v1784
        %1786 = vmatmul.bf16.gmra.mxu0 %v1038
        %v1787 = vpop.f32.mrf.mxu0
        %v1788 = vadd.f32 0.0, %v1787
        %v1789 = vpop.f32.mrf.mxu0
        %v1790 = vadd.f32 0.0, %v1789
        %1791 = vmatmul.bf16.gmra.mxu0 %v1039
        %v1792 = vpop.f32.mrf.mxu0
        %v1793 = vadd.f32 0.0, %v1792
        %v1794 = vpop.f32.mrf.mxu0
        %v1795 = vadd.f32 0.0, %v1794
        %1796 = vmatmul.bf16.gmra.mxu0 %v1040
        %v1797 = vpop.f32.mrf.mxu0
        %v1798 = vadd.f32 0.0, %v1797
        %v1799 = vpop.f32.mrf.mxu0
        %v1800 = vadd.f32 0.0, %v1799
        %1801 = vmatmul.bf16.gmra.mxu0 %v1041
        %v1802 = vpop.f32.mrf.mxu0
        %v1803 = vadd.f32 0.0, %v1802
        %v1804 = vpop.f32.mrf.mxu0
        %v1805 = vadd.f32 0.0, %v1804
        %1806 = vmatmul.bf16.gmra.mxu0 %v1042
        %v1807 = vpop.f32.mrf.mxu0
        %v1808 = vadd.f32 0.0, %v1807
        %v1809 = vpop.f32.mrf.mxu0
        %v1810 = vadd.f32 0.0, %v1809
        %1811 = vmatmul.bf16.gmra.mxu0 %v1043
        %v1812 = vpop.f32.mrf.mxu0
        %v1813 = vadd.f32 0.0, %v1812
        %v1814 = vpop.f32.mrf.mxu0
        %v1815 = vadd.f32 0.0, %v1814
        %1816 = vmatmul.bf16.gmra.mxu0 %v1044
        %v1817 = vpop.f32.mrf.mxu0
        %v1818 = vadd.f32 0.0, %v1817
        %v1819 = vpop.f32.mrf.mxu0
        %v1820 = vadd.f32 0.0, %v1819
        %1821 = vmatmul.bf16.gmra.mxu0 %v1045
        %v1822 = vpop.f32.mrf.mxu0
        %v1823 = vadd.f32 0.0, %v1822
        %v1824 = vpop.f32.mrf.mxu0
        %v1825 = vadd.f32 0.0, %v1824
        %1826 = vmatmul.bf16.gmra.mxu0 %v1046
        %v1827 = vpop.f32.mrf.mxu0
        %v1828 = vadd.f32 0.0, %v1827
        %v1829 = vpop.f32.mrf.mxu0
        %v1830 = vadd.f32 0.0, %v1829
        %1831 = vmatmul.bf16.gmra.mxu0 %v1047
        %v1832 = vpop.f32.mrf.mxu0
        %v1833 = vadd.f32 0.0, %v1832
        %v1834 = vpop.f32.mrf.mxu0
        %v1835 = vadd.f32 0.0, %v1834
        %1836 = vmatmul.bf16.gmra.mxu0 %v1048
        %v1837 = vpop.f32.mrf.mxu0
        %v1838 = vadd.f32 0.0, %v1837
        %v1839 = vpop.f32.mrf.mxu0
        %v1840 = vadd.f32 0.0, %v1839
        %1841 = vmatmul.bf16.gmra.mxu0 %v1049
        %v1842 = vpop.f32.mrf.mxu0
        %v1843 = vadd.f32 0.0, %v1842
        %v1844 = vpop.f32.mrf.mxu0
        %v1845 = vadd.f32 0.0, %v1844
        %1846 = vmatmul.bf16.gmra.mxu0 %v1050
        %v1847 = vpop.f32.mrf.mxu0
        %v1848 = vadd.f32 0.0, %v1847
        %v1849 = vpop.f32.mrf.mxu0
        %v1850 = vadd.f32 0.0, %v1849
        %1851 = vmatmul.bf16.gmra.mxu0 %v1051
        %v1852 = vpop.f32.mrf.mxu0
        %v1853 = vadd.f32 0.0, %v1852
        %v1854 = vpop.f32.mrf.mxu0
        %v1855 = vadd.f32 0.0, %v1854
        %1856 = vmatmul.bf16.gmra.mxu0 %v1052
        %v1857 = vpop.f32.mrf.mxu0
        %v1858 = vadd.f32 0.0, %v1857
        %v1859 = vpop.f32.mrf.mxu0
        %v1860 = vadd.f32 0.0, %v1859
        %1861 = vmatmul.bf16.gmra.mxu0 %v1053
        %v1862 = vpop.f32.mrf.mxu0
        %v1863 = vadd.f32 0.0, %v1862
        %v1864 = vpop.f32.mrf.mxu0
        %v1865 = vadd.f32 0.0, %v1864
        %1866 = vmatmul.bf16.gmra.mxu0 %v1054
        %v1867 = vpop.f32.mrf.mxu0
        %v1868 = vadd.f32 0.0, %v1867
        %v1869 = vpop.f32.mrf.mxu0
        %v1870 = vadd.f32 0.0, %v1869
        %1871 = vmatmul.bf16.gmra.mxu0 %v1055
        %v1872 = vpop.f32.mrf.mxu0
        %v1873 = vadd.f32 0.0, %v1872
        %v1874 = vpop.f32.mrf.mxu0
        %v1875 = vadd.f32 0.0, %v1874
        %1876 = vmatmul.bf16.gmra.mxu0 %v1056
        %v1877 = vpop.f32.mrf.mxu0
        %v1878 = vadd.f32 0.0, %v1877
        %v1879 = vpop.f32.mrf.mxu0
        %v1880 = vadd.f32 0.0, %v1879
        %1881 = vdwg.mxu0
        %1882 = vst [vmem:[%s137] sm:$0xff] %v1243
        %1883 = vst [vmem:[%s137 + $0x8] sm:$0xff] %v1245
        %1884 = vst [vmem:[%s137 + $0x10] sm:$0xff] %v1248
        %1885 = vst [vmem:[%s137 + $0x18] sm:$0xff] %v1250
        %1886 = vst [vmem:[%s137 + $0x20] sm:$0xff] %v1253
        %1887 = vst [vmem:[%s137 + $0x28] sm:$0xff] %v1255
        %1888 = vst [vmem:[%s137 + $0x30] sm:$0xff] %v1258
        %1889 = vst [vmem:[%s137 + $0x38] sm:$0xff] %v1260
        %1890 = vst [vmem:[%s137 + $0x40] sm:$0xff] %v1263
        %1891 = vst [vmem:[%s137 + $0x48] sm:$0xff] %v1265
        %1892 = vst [vmem:[%s137 + $0x50] sm:$0xff] %v1268
        %1893 = vst [vmem:[%s137 + $0x58] sm:$0xff] %v1270
        %1894 = vst [vmem:[%s137 + $0x60] sm:$0xff] %v1273
        %1895 = vst [vmem:[%s137 + $0x68] sm:$0xff] %v1275
        %1896 = vst [vmem:[%s137 + $0x70] sm:$0xff] %v1278
        %1897 = vst [vmem:[%s137 + $0x78] sm:$0xff] %v1280
        %1898 = vst [vmem:[%s137 + $0x80] sm:$0xff] %v1283
        %1899 = vst [vmem:[%s137 + $0x88] sm:$0xff] %v1285
        %1900 = vst [vmem:[%s137 + $0x90] sm:$0xff] %v1288
        %1901 = vst [vmem:[%s137 + $0x98] sm:$0xff] %v1290
        %1902 = vst [vmem:[%s137 + $0xa0] sm:$0xff] %v1293
        %1903 = vst [vmem:[%s137 + $0xa8] sm:$0xff] %v1295
        %1904 = vst [vmem:[%s137 + $0xb0] sm:$0xff] %v1298
        %1905 = vst [vmem:[%s137 + $0xb8] sm:$0xff] %v1300
        %1906 = vst [vmem:[%s137 + $0xc0] sm:$0xff] %v1303
        %1907 = vst [vmem:[%s137 + $0xc8] sm:$0xff] %v1305
        %1908 = vst [vmem:[%s137 + $0xd0] sm:$0xff] %v1308
        %1909 = vst [vmem:[%s137 + $0xd8] sm:$0xff] %v1310
        %1910 = vst [vmem:[%s137 + $0xe0] sm:$0xff] %v1313
        %1911 = vst [vmem:[%s137 + $0xe8] sm:$0xff] %v1315
        %1912 = vst [vmem:[%s137 + $0xf0] sm:$0xff] %v1318
        %1913 = vst [vmem:[%s137 + $0xf8] sm:$0xff] %v1320
        %1914 = vst [vmem:[%s137 + $0x100] sm:$0xff] %v1323
        %1915 = vst [vmem:[%s137 + $0x108] sm:$0xff] %v1325
        %1916 = vst [vmem:[%s137 + $0x110] sm:$0xff] %v1328
        %1917 = vst [vmem:[%s137 + $0x118] sm:$0xff] %v1330
        %1918 = vst [vmem:[%s137 + $0x120] sm:$0xff] %v1333
        %1919 = vst [vmem:[%s137 + $0x128] sm:$0xff] %v1335
        %1920 = vst [vmem:[%s137 + $0x130] sm:$0xff] %v1338
        %1921 = vst [vmem:[%s137 + $0x138] sm:$0xff] %v1340
        %1922 = vst [vmem:[%s137 + $0x140] sm:$0xff] %v1343
        %1923 = vst [vmem:[%s137 + $0x148] sm:$0xff] %v1345
        %1924 = vst [vmem:[%s137 + $0x150] sm:$0xff] %v1348
        %1925 = vst [vmem:[%s137 + $0x158] sm:$0xff] %v1350
        %1926 = vst [vmem:[%s137 + $0x160] sm:$0xff] %v1353
        %1927 = vst [vmem:[%s137 + $0x168] sm:$0xff] %v1355
        %1928 = vst [vmem:[%s137 + $0x170] sm:$0xff] %v1358
        %1929 = vst [vmem:[%s137 + $0x178] sm:$0xff] %v1360
        %1930 = vst [vmem:[%s137 + $0x180] sm:$0xff] %v1363
        %1931 = vst [vmem:[%s137 + $0x188] sm:$0xff] %v1365
        %1932 = vst [vmem:[%s137 + $0x190] sm:$0xff] %v1368
        %1933 = vst [vmem:[%s137 + $0x198] sm:$0xff] %v1370
        %1934 = vst [vmem:[%s137 + $0x1a0] sm:$0xff] %v1373
        %1935 = vst [vmem:[%s137 + $0x1a8] sm:$0xff] %v1375
        %1936 = vst [vmem:[%s137 + $0x1b0] sm:$0xff] %v1378
        %1937 = vst [vmem:[%s137 + $0x1b8] sm:$0xff] %v1380
        %1938 = vst [vmem:[%s137 + $0x1c0] sm:$0xff] %v1383
        %1939 = vst [vmem:[%s137 + $0x1c8] sm:$0xff] %v1385
        %1940 = vst [vmem:[%s137 + $0x1d0] sm:$0xff] %v1388
        %1941 = vst [vmem:[%s137 + $0x1d8] sm:$0xff] %v1390
        %1942 = vst [vmem:[%s137 + $0x1e0] sm:$0xff] %v1393
        %1943 = vst [vmem:[%s137 + $0x1e8] sm:$0xff] %v1395
        %1944 = vst [vmem:[%s137 + $0x1f0] sm:$0xff] %v1398
        %1945 = vst [vmem:[%s137 + $0x1f8] sm:$0xff] %v1400
        %1946 = vst [vmem:[%s137 + $0x200] sm:$0xff] %v1403
        %1947 = vst [vmem:[%s137 + $0x208] sm:$0xff] %v1405
        %1948 = vst [vmem:[%s137 + $0x210] sm:$0xff] %v1408
        %1949 = vst [vmem:[%s137 + $0x218] sm:$0xff] %v1410
        %1950 = vst [vmem:[%s137 + $0x220] sm:$0xff] %v1413
        %1951 = vst [vmem:[%s137 + $0x228] sm:$0xff] %v1415
        %1952 = vst [vmem:[%s137 + $0x230] sm:$0xff] %v1418
        %1953 = vst [vmem:[%s137 + $0x238] sm:$0xff] %v1420
        %1954 = vst [vmem:[%s137 + $0x240] sm:$0xff] %v1423
        %1955 = vst [vmem:[%s137 + $0x248] sm:$0xff] %v1425
        %1956 = vst [vmem:[%s137 + $0x250] sm:$0xff] %v1428
        %1957 = vst [vmem:[%s137 + $0x258] sm:$0xff] %v1430
        %1958 = vst [vmem:[%s137 + $0x260] sm:$0xff] %v1433
        %1959 = vst [vmem:[%s137 + $0x268] sm:$0xff] %v1435
        %1960 = vst [vmem:[%s137 + $0x270] sm:$0xff] %v1438
        %1961 = vst [vmem:[%s137 + $0x278] sm:$0xff] %v1440
        %1962 = vst [vmem:[%s137 + $0x280] sm:$0xff] %v1443
        %1963 = vst [vmem:[%s137 + $0x288] sm:$0xff] %v1445
        %1964 = vst [vmem:[%s137 + $0x290] sm:$0xff] %v1448
        %1965 = vst [vmem:[%s137 + $0x298] sm:$0xff] %v1450
        %1966 = vst [vmem:[%s137 + $0x2a0] sm:$0xff] %v1453
        %1967 = vst [vmem:[%s137 + $0x2a8] sm:$0xff] %v1455
        %1968 = vst [vmem:[%s137 + $0x2b0] sm:$0xff] %v1458
        %1969 = vst [vmem:[%s137 + $0x2b8] sm:$0xff] %v1460
        %1970 = vst [vmem:[%s137 + $0x2c0] sm:$0xff] %v1463
        %1971 = vst [vmem:[%s137 + $0x2c8] sm:$0xff] %v1465
        %1972 = vst [vmem:[%s137 + $0x2d0] sm:$0xff] %v1468
        %1973 = vst [vmem:[%s137 + $0x2d8] sm:$0xff] %v1470
        %1974 = vst [vmem:[%s137 + $0x2e0] sm:$0xff] %v1473
        %1975 = vst [vmem:[%s137 + $0x2e8] sm:$0xff] %v1475
        %1976 = vst [vmem:[%s137 + $0x2f0] sm:$0xff] %v1478
        %1977 = vst [vmem:[%s137 + $0x2f8] sm:$0xff] %v1480
        %1978 = vst [vmem:[%s137 + $0x300] sm:$0xff] %v1483
        %1979 = vst [vmem:[%s137 + $0x308] sm:$0xff] %v1485
        %1980 = vst [vmem:[%s137 + $0x310] sm:$0xff] %v1488
        %1981 = vst [vmem:[%s137 + $0x318] sm:$0xff] %v1490
        %1982 = vst [vmem:[%s137 + $0x320] sm:$0xff] %v1493
        %1983 = vst [vmem:[%s137 + $0x328] sm:$0xff] %v1495
        %1984 = vst [vmem:[%s137 + $0x330] sm:$0xff] %v1498
        %1985 = vst [vmem:[%s137 + $0x338] sm:$0xff] %v1500
        %1986 = vst [vmem:[%s137 + $0x340] sm:$0xff] %v1503
        %1987 = vst [vmem:[%s137 + $0x348] sm:$0xff] %v1505
        %1988 = vst [vmem:[%s137 + $0x350] sm:$0xff] %v1508
        %1989 = vst [vmem:[%s137 + $0x358] sm:$0xff] %v1510
        %1990 = vst [vmem:[%s137 + $0x360] sm:$0xff] %v1513
        %1991 = vst [vmem:[%s137 + $0x368] sm:$0xff] %v1515
        %1992 = vst [vmem:[%s137 + $0x370] sm:$0xff] %v1518
        %1993 = vst [vmem:[%s137 + $0x378] sm:$0xff] %v1520
        %1994 = vst [vmem:[%s137 + $0x380] sm:$0xff] %v1523
        %1995 = vst [vmem:[%s137 + $0x388] sm:$0xff] %v1525
        %1996 = vst [vmem:[%s137 + $0x390] sm:$0xff] %v1528
        %1997 = vst [vmem:[%s137 + $0x398] sm:$0xff] %v1530
        %1998 = vst [vmem:[%s137 + $0x3a0] sm:$0xff] %v1533
        %1999 = vst [vmem:[%s137 + $0x3a8] sm:$0xff] %v1535
        %2000 = vst [vmem:[%s137 + $0x3b0] sm:$0xff] %v1538
        %2001 = vst [vmem:[%s137 + $0x3b8] sm:$0xff] %v1540
        %2002 = vst [vmem:[%s137 + $0x3c0] sm:$0xff] %v1543
        %2003 = vst [vmem:[%s137 + $0x3c8] sm:$0xff] %v1545
        %2004 = vst [vmem:[%s137 + $0x3d0] sm:$0xff] %v1548
        %2005 = vst [vmem:[%s137 + $0x3d8] sm:$0xff] %v1550
        %2006 = vst [vmem:[%s137 + $0x3e0] sm:$0xff] %v1553
        %2007 = vst [vmem:[%s137 + $0x3e8] sm:$0xff] %v1555
        %2008 = vst [vmem:[%s137 + $0x3f0] sm:$0xff] %v1558
        %2009 = vst [vmem:[%s137 + $0x3f8] sm:$0xff] %v1560
        %2010 = vst [vmem:[%s137 + $0x400] sm:$0xff] %v1563
        %2011 = vst [vmem:[%s137 + $0x408] sm:$0xff] %v1565
        %2012 = vst [vmem:[%s137 + $0x410] sm:$0xff] %v1568
        %2013 = vst [vmem:[%s137 + $0x418] sm:$0xff] %v1570
        %2014 = vst [vmem:[%s137 + $0x420] sm:$0xff] %v1573
        %2015 = vst [vmem:[%s137 + $0x428] sm:$0xff] %v1575
        %2016 = vst [vmem:[%s137 + $0x430] sm:$0xff] %v1578
        %2017 = vst [vmem:[%s137 + $0x438] sm:$0xff] %v1580
        %2018 = vst [vmem:[%s137 + $0x440] sm:$0xff] %v1583
        %2019 = vst [vmem:[%s137 + $0x448] sm:$0xff] %v1585
        %2020 = vst [vmem:[%s137 + $0x450] sm:$0xff] %v1588
        %2021 = vst [vmem:[%s137 + $0x458] sm:$0xff] %v1590
        %2022 = vst [vmem:[%s137 + $0x460] sm:$0xff] %v1593
        %2023 = vst [vmem:[%s137 + $0x468] sm:$0xff] %v1595
        %2024 = vst [vmem:[%s137 + $0x470] sm:$0xff] %v1598
        %2025 = vst [vmem:[%s137 + $0x478] sm:$0xff] %v1600
        %2026 = vst [vmem:[%s137 + $0x480] sm:$0xff] %v1603
        %2027 = vst [vmem:[%s137 + $0x488] sm:$0xff] %v1605
        %2028 = vst [vmem:[%s137 + $0x490] sm:$0xff] %v1608
        %2029 = vst [vmem:[%s137 + $0x498] sm:$0xff] %v1610
        %2030 = vst [vmem:[%s137 + $0x4a0] sm:$0xff] %v1613
        %2031 = vst [vmem:[%s137 + $0x4a8] sm:$0xff] %v1615
        %2032 = vst [vmem:[%s137 + $0x4b0] sm:$0xff] %v1618
        %2033 = vst [vmem:[%s137 + $0x4b8] sm:$0xff] %v1620
        %2034 = vst [vmem:[%s137 + $0x4c0] sm:$0xff] %v1623
        %2035 = vst [vmem:[%s137 + $0x4c8] sm:$0xff] %v1625
        %2036 = vst [vmem:[%s137 + $0x4d0] sm:$0xff] %v1628
        %2037 = vst [vmem:[%s137 + $0x4d8] sm:$0xff] %v1630
        %2038 = vst [vmem:[%s137 + $0x4e0] sm:$0xff] %v1633
        %2039 = vst [vmem:[%s137 + $0x4e8] sm:$0xff] %v1635
        %2040 = vst [vmem:[%s137 + $0x4f0] sm:$0xff] %v1638
        %2041 = vst [vmem:[%s137 + $0x4f8] sm:$0xff] %v1640
        %2042 = vst [vmem:[%s137 + $0x500] sm:$0xff] %v1643
        %2043 = vst [vmem:[%s137 + $0x508] sm:$0xff] %v1645
        %2044 = vst [vmem:[%s137 + $0x510] sm:$0xff] %v1648
        %2045 = vst [vmem:[%s137 + $0x518] sm:$0xff] %v1650
        %2046 = vst [vmem:[%s137 + $0x520] sm:$0xff] %v1653
        %2047 = vst [vmem:[%s137 + $0x528] sm:$0xff] %v1655
        %2048 = vst [vmem:[%s137 + $0x530] sm:$0xff] %v1658
        %2049 = vst [vmem:[%s137 + $0x538] sm:$0xff] %v1660
        %2050 = vst [vmem:[%s137 + $0x540] sm:$0xff] %v1663
        %2051 = vst [vmem:[%s137 + $0x548] sm:$0xff] %v1665
        %2052 = vst [vmem:[%s137 + $0x550] sm:$0xff] %v1668
        %2053 = vst [vmem:[%s137 + $0x558] sm:$0xff] %v1670
        %2054 = vst [vmem:[%s137 + $0x560] sm:$0xff] %v1673
        %2055 = vst [vmem:[%s137 + $0x568] sm:$0xff] %v1675
        %2056 = vst [vmem:[%s137 + $0x570] sm:$0xff] %v1678
        %2057 = vst [vmem:[%s137 + $0x578] sm:$0xff] %v1680
        %2058 = vst [vmem:[%s137 + $0x580] sm:$0xff] %v1683
        %2059 = vst [vmem:[%s137 + $0x588] sm:$0xff] %v1685
        %2060 = vst [vmem:[%s137 + $0x590] sm:$0xff] %v1688
        %2061 = vst [vmem:[%s137 + $0x598] sm:$0xff] %v1690
        %2062 = vst [vmem:[%s137 + $0x5a0] sm:$0xff] %v1693
        %2063 = vst [vmem:[%s137 + $0x5a8] sm:$0xff] %v1695
        %2064 = vst [vmem:[%s137 + $0x5b0] sm:$0xff] %v1698
        %2065 = vst [vmem:[%s137 + $0x5b8] sm:$0xff] %v1700
        %2066 = vst [vmem:[%s137 + $0x5c0] sm:$0xff] %v1703
        %2067 = vst [vmem:[%s137 + $0x5c8] sm:$0xff] %v1705
        %2068 = vst [vmem:[%s137 + $0x5d0] sm:$0xff] %v1708
        %2069 = vst [vmem:[%s137 + $0x5d8] sm:$0xff] %v1710
        %2070 = vst [vmem:[%s137 + $0x5e0] sm:$0xff] %v1713
        %2071 = vst [vmem:[%s137 + $0x5e8] sm:$0xff] %v1715
        %2072 = vst [vmem:[%s137 + $0x5f0] sm:$0xff] %v1718
        %2073 = vst [vmem:[%s137 + $0x5f8] sm:$0xff] %v1720
        %2074 = vst [vmem:[%s137 + $0x600] sm:$0xff] %v1723
        %2075 = vst [vmem:[%s137 + $0x608] sm:$0xff] %v1725
        %2076 = vst [vmem:[%s137 + $0x610] sm:$0xff] %v1728
        %2077 = vst [vmem:[%s137 + $0x618] sm:$0xff] %v1730
        %2078 = vst [vmem:[%s137 + $0x620] sm:$0xff] %v1733
        %2079 = vst [vmem:[%s137 + $0x628] sm:$0xff] %v1735
        %2080 = vst [vmem:[%s137 + $0x630] sm:$0xff] %v1738
        %2081 = vst [vmem:[%s137 + $0x638] sm:$0xff] %v1740
        %2082 = vst [vmem:[%s137 + $0x640] sm:$0xff] %v1743
        %2083 = vst [vmem:[%s137 + $0x648] sm:$0xff] %v1745
        %2084 = vst [vmem:[%s137 + $0x650] sm:$0xff] %v1748
        %2085 = vst [vmem:[%s137 + $0x658] sm:$0xff] %v1750
        %2086 = vst [vmem:[%s137 + $0x660] sm:$0xff] %v1753
        %2087 = vst [vmem:[%s137 + $0x668] sm:$0xff] %v1755
        %2088 = vst [vmem:[%s137 + $0x670] sm:$0xff] %v1758
        %2089 = vst [vmem:[%s137 + $0x678] sm:$0xff] %v1760
        %2090 = vst [vmem:[%s137 + $0x680] sm:$0xff] %v1763
        %2091 = vst [vmem:[%s137 + $0x688] sm:$0xff] %v1765
        %2092 = vst [vmem:[%s137 + $0x690] sm:$0xff] %v1768
        %2093 = vst [vmem:[%s137 + $0x698] sm:$0xff] %v1770
        %2094 = vst [vmem:[%s137 + $0x6a0] sm:$0xff] %v1773
        %2095 = vst [vmem:[%s137 + $0x6a8] sm:$0xff] %v1775
        %2096 = vst [vmem:[%s137 + $0x6b0] sm:$0xff] %v1778
        %2097 = vst [vmem:[%s137 + $0x6b8] sm:$0xff] %v1780
        %2098 = vst [vmem:[%s137 + $0x6c0] sm:$0xff] %v1783
        %2099 = vst [vmem:[%s137 + $0x6c8] sm:$0xff] %v1785
        %2100 = vst [vmem:[%s137 + $0x6d0] sm:$0xff] %v1788
        %2101 = vst [vmem:[%s137 + $0x6d8] sm:$0xff] %v1790
        %2102 = vst [vmem:[%s137 + $0x6e0] sm:$0xff] %v1793
        %2103 = vst [vmem:[%s137 + $0x6e8] sm:$0xff] %v1795
        %2104 = vst [vmem:[%s137 + $0x6f0] sm:$0xff] %v1798
        %2105 = vst [vmem:[%s137 + $0x6f8] sm:$0xff] %v1800
        %2106 = vst [vmem:[%s137 + $0x700] sm:$0xff] %v1803
        %2107 = vst [vmem:[%s137 + $0x708] sm:$0xff] %v1805
        %2108 = vst [vmem:[%s137 + $0x710] sm:$0xff] %v1808
        %2109 = vst [vmem:[%s137 + $0x718] sm:$0xff] %v1810
        %2110 = vst [vmem:[%s137 + $0x720] sm:$0xff] %v1813
        %2111 = vst [vmem:[%s137 + $0x728] sm:$0xff] %v1815
        %2112 = vst [vmem:[%s137 + $0x730] sm:$0xff] %v1818
        %2113 = vst [vmem:[%s137 + $0x738] sm:$0xff] %v1820
        %2114 = vst [vmem:[%s137 + $0x740] sm:$0xff] %v1823
        %2115 = vst [vmem:[%s137 + $0x748] sm:$0xff] %v1825
        %2116 = vst [vmem:[%s137 + $0x750] sm:$0xff] %v1828
        %2117 = vst [vmem:[%s137 + $0x758] sm:$0xff] %v1830
        %2118 = vst [vmem:[%s137 + $0x760] sm:$0xff] %v1833
        %2119 = vst [vmem:[%s137 + $0x768] sm:$0xff] %v1835
        %2120 = vst [vmem:[%s137 + $0x770] sm:$0xff] %v1838
        %2121 = vst [vmem:[%s137 + $0x778] sm:$0xff] %v1840
        %2122 = vst [vmem:[%s137 + $0x780] sm:$0xff] %v1843
        %2123 = vst [vmem:[%s137 + $0x788] sm:$0xff] %v1845
        %2124 = vst [vmem:[%s137 + $0x790] sm:$0xff] %v1848
        %2125 = vst [vmem:[%s137 + $0x798] sm:$0xff] %v1850
        %2126 = vst [vmem:[%s137 + $0x7a0] sm:$0xff] %v1853
        %2127 = vst [vmem:[%s137 + $0x7a8] sm:$0xff] %v1855
        %2128 = vst [vmem:[%s137 + $0x7b0] sm:$0xff] %v1858
        %2129 = vst [vmem:[%s137 + $0x7b8] sm:$0xff] %v1860
        %2130 = vst [vmem:[%s137 + $0x7c0] sm:$0xff] %v1863
        %2131 = vst [vmem:[%s137 + $0x7c8] sm:$0xff] %v1865
        %2132 = vst [vmem:[%s137 + $0x7d0] sm:$0xff] %v1868
        %2133 = vst [vmem:[%s137 + $0x7d8] sm:$0xff] %v1870
        %2134 = vst [vmem:[%s137 + $0x7e0] sm:$0xff] %v1873
        %2135 = vst [vmem:[%s137 + $0x7e8] sm:$0xff] %v1875
        %2136 = vst [vmem:[%s137 + $0x7f0] sm:$0xff] %v1878
        %2137 = vst [vmem:[%s137 + $0x7f8] sm:$0xff] %v1880
        %s2138 = sand.u32 %s71, 1
        %s2139 = scalar_lea.sflag [#allocation3], %s2138
        %s2140 = sand.u32 %s71, 1
        %s2141 = smul.addr %s2140, 2048
        %s2142 = scalar_lea.vmem [#allocation2], %s2141
        // Predicated region
        $region29: #{ldc_conv3d.1} parent=27 // pred_check
          %p2143 = pneg %p81
        $region30: #{ldc_conv3d.1} parent=27 // pred_check_branch
          %2145 = sbr.rel (%p2143) target = $region32
        $region31: #{ldc_conv3d.1} parent=27 // pred_region
          %s2146 = smul.u32 256, %s16
          %2148 = vsyncadd %s2139, 0
          %s2149 = smul.addr %s2146, 8
          %s2150 = scalar_lea.hbm %s2, %s2149
          %s2151 = sshll.u32 %s2142, 4
          %s2152 = int_to_ptr.vmem [resolvable:$true] %s2151
          %s2153 = sshll.u32 %s2150, 4
          %s2154 = int_to_ptr.hbm [resolvable:$true] %s2153
          %2159 = dma.vmem_to_hbm [thread:$0]  %s2152, 32768, %s2154, %s2139, 128, 128, 8
        $region32: #{ldc_conv3d.1} parent=27 // pred_fallthru
          _
      $region28: #{ldc_conv3d.1} parent=5 // pred_fallthru
        _
      %p2160 = scmp.le.s32.totalorder 2, %s11
      // Predicated region
      $region33: #{ldc_conv3d.1} parent=5 // pred_check
        %p2161 = pneg %p2160
      $region34: #{ldc_conv3d.1} parent=5 // pred_check_branch
        %2163 = sbr.rel (%p2161) target = $region36
      $region35: #{ldc_conv3d.1} parent=5 // pred_region
        %s2164 = ssub.s32 %s11, 2
        // Predicated region
        $region37: #{ldc_conv3d.1} parent=35 // pred_check
          %p2165 = pneg %p87
        $region38: #{ldc_conv3d.1} parent=35 // pred_check_branch
          %2167 = sbr.rel (%p2165) target = $region40
        $region39: #{ldc_conv3d.1} parent=35 // pred_region
          %s2168 = sand.u32 %s72, 1
          %s2169 = scalar_lea.sflag [#allocation3], %s2168
          %s2170 = sand.u32 %s72, 1
          %s2171 = smul.addr %s2170, 2048
          %s2172 = scalar_lea.vmem [#allocation2], %s2171
          %2174 = dma.done %s2169, 32768
        $region40: #{ldc_conv3d.1} parent=35 // pred_fallthru
          _
      $region36: #{ldc_conv3d.1} parent=5 // pred_fallthru
        _
    $region6: #{ldc_conv3d.1} parent=1 // loop_footer
      %s15 = sadd.s32 1, %s11
    $region7: #{ldc_conv3d.1} parent=1 // loop_footer_branch
      %10 = sbr.rel target = $region3
    $region8: #{ldc_conv3d.1} parent=1 // loop_exit
      _
    %2175 = vsyncpa [#allocation3], 1
    %s2176 = scalar_lea.sflag [#allocation3], 1
    %2177 = vsyncpa %s2176, 1

</llo_original>
